<compile_context>
chip_gen: v7x
topology: tpu7x:2x2x1
jax: 0.10.0
libtpu: 0.0.40
codegen_flags: <defaults>
</compile_context>

<pallas_src>
import functools

import jax
import jax.numpy as jnp
from jax import lax
from jax.experimental import pallas as pl
from jax.experimental.pallas import tpu as pltpu

_BN_EPS = 1e-5


def _hardswish(x):
    return x * jnp.clip(x + 3.0, 0.0, 6.0) * (1.0 / 6.0)


def _hardsigmoid(x):
    return jnp.clip(x + 3.0, 0.0, 6.0) * (1.0 / 6.0)


# ----------------------------- fused Pallas kernel ----------------------------

def _bneck_kernel(*refs, k, stride, h, w, out_h, out_w, img_block,
                  has_expand, use_se, residual):
    """One grid step == img_block images, channel-major (C, img_block*H*W)."""
    it = iter(refs)
    x_ref = next(it)                                  # (cin, n)
    if has_expand:
        w_exp_ref = next(it)                          # (e, cin)
        b1_ref = next(it)                             # (e, 1)
    w_dw_ref = next(it)                               # (e, k*k)
    b2_ref = next(it)                                 # (e, 1)
    mask_ref = next(it)                               # (k*k, n)
    if use_se:
        w_se1_ref = next(it)                          # (red, e)
        w_se2_ref = next(it)                          # (e, red)
    w_proj_ref = next(it)                             # (cout, e)
    b3_ref = next(it)                                 # (cout, 1)
    o_ref = next(it)                                  # (cout, n_out)

    pad = k // 2
    hw = h * w
    n = img_block * hw
    hw_out = out_h * out_w
    n_out = img_block * hw_out

    # ---- expand 1x1 conv (BN scale pre-folded) + hardswish --------------------
    if has_expand:
        y = jnp.dot(w_exp_ref[...], x_ref[...],
                    preferred_element_type=jnp.float32)            # (e, n)
        y = _hardswish(y + b1_ref[...])
    else:
        y = x_ref[...].astype(jnp.float32)                          # cin == e

    # ---- depthwise kxk conv: lane rolls (XLU) + precomputed border masks ------
    acc = jnp.zeros_like(y)
    for di in range(k):
        for dj in range(k):
            t = di * k + dj
            s = (di - pad) * w + (dj - pad)            # flat spatial offset
            tap_w = w_dw_ref[:, t:t + 1]               # (e, 1), per-channel tap
            if s == 0:                                 # center tap: always valid
                acc = acc + y * tap_w
            else:
                shifted = pltpu.roll(y, shift=(-s) % n, axis=1)   # y[:, P+s]
                acc = acc + (shifted * mask_ref[t:t + 1, :]) * tap_w
    y2 = _hardswish(acc + b2_ref[...])                              # (e, n)

    if stride != 1:
        # TODO(synk): wasteful for stride>1 (full-grid compute then subsample).
        e = y2.shape[0]
        y2 = y2.reshape(e, img_block, h, w)[:, :, ::stride, ::stride]
        y2 = y2.reshape(e, n_out)

    # ---- squeeze-excite (fused: pool + two tiny matmuls + gate), per image ----
    if use_se:
        inv = 1.0 / hw_out

        def gate(seg):
            q = jnp.sum(seg, axis=1, keepdims=True) * inv           # (e, 1)
            hid = jnp.maximum(
                jnp.dot(w_se1_ref[...], q,
                        preferred_element_type=jnp.float32), 0.0)   # (red, 1)
            alpha = _hardsigmoid(
                jnp.dot(w_se2_ref[...], hid,
                        preferred_element_type=jnp.float32))        # (e, 1)
            return seg * alpha

        if img_block == 1:
            y2 = gate(y2)
        else:
            y2 = jnp.concatenate(
                [gate(y2[:, bi * hw_out:(bi + 1) * hw_out])
                 for bi in range(img_block)], axis=1)

    # ---- project 1x1 conv (BN folded) + residual, lane-dense channel-major ----
    o = jnp.dot(w_proj_ref[...], y2,
                preferred_element_type=jnp.float32) + b3_ref[...]   # (cout, n_out)
    if residual:
        o = o + x_ref[...]          # residual implies cin==cout, stride==1
    o_ref[...] = o.astype(o_ref.dtype)


# ----------------------------- wrapper ----------------------------------------

def _fold_bn(bn):
    gamma, beta, mean, var = bn
    scale = gamma / jnp.sqrt(var + _BN_EPS)
    shift = beta - mean * scale
    return scale, shift


def _pick_img_block(b):
    # Largest images-per-step (<=8) that still leaves >=2 grid steps, so v7x's
    # two TensorCores both get work while per-step overhead is amortized.
    for cand in range(min(b, 8), 0, -1):
        if b % cand == 0 and (b // cand) >= 2:
            return cand
    return 1


@functools.partial(jax.jit, static_argnames=("kernel_size", "stride", "use_se"))
def bneck_forward(x, p, *, kernel_size, stride, use_se):
    """x: NCHW float32; p: PyTorch-convention parameters (see __main__)."""
    b, cin, h, w = x.shape
    k = kernel_size
    pad = k // 2
    e = p["w_dw_oihw"].shape[0]
    cout = p["w_proj_oihw"].shape[0]
    has_expand = (cin != e)
    residual = (cin == cout) and (stride == 1)
    out_h = (h + 2 * pad - k) // stride + 1
    out_w = (w + 2 * pad - k) // stride + 1
    hw, ohw = h * w, out_h * out_w

    img_block = _pick_img_block(b)
    num_steps = b // img_block
    n = img_block * hw
    n_out = img_block * ohw

    # -- fold eval-mode BN scales into the conv weights (tiny host-side ops) ----
    s2, sh2 = _fold_bn(p["bn2"])
    s3, sh3 = _fold_bn(p["bn3"])
    w_dw = (p["w_dw_oihw"][:, 0, :, :] * s2[:, None, None]).reshape(e, k * k)
    b2 = sh2.reshape(e, 1)
    w_proj = p["w_proj_oihw"][:, :, 0, 0] * s3[:, None]               # (cout, e)
    b3 = sh3.reshape(cout, 1)

    # -- per-tap zero-padding border masks (shared by all channels / images) ----
    ri = jnp.arange(h)
    ci = jnp.arange(w)
    tap_masks = []
    for di in range(k):
        rv = ((ri + di - pad) >= 0) & ((ri + di - pad) < h)
        for dj in range(k):
            cv = ((ci + dj - pad) >= 0) & ((ci + dj - pad) < w)
            m = (rv[:, None] & cv[None, :]).astype(jnp.float32).reshape(hw)
            tap_masks.append(jnp.tile(m, img_block))
    tap_mask = jnp.stack(tap_masks, axis=0)                           # (k*k, n)

    # -- single channel-major input view: images concatenated on the lane axis --
    x_pk = (x.reshape(num_steps, img_block, cin, hw)
             .transpose(0, 2, 1, 3)
             .reshape(num_steps, cin, n))

    wconst = lambda shape: pl.BlockSpec(shape, lambda i: (0, 0))
    args = [x_pk]
    in_specs = [pl.BlockSpec((None, cin, n), lambda i: (i, 0, 0))]
    if has_expand:
        s1, sh1 = _fold_bn(p["bn1"])
        w_exp = p["w_exp_oihw"][:, :, 0, 0] * s1[:, None]             # (e, cin)
        b1 = sh1.reshape(e, 1)
        args += [w_exp, b1]
        in_specs += [wconst((e, cin)), wconst((e, 1))]
    args += [w_dw, b2, tap_mask]
    in_specs += [wconst((e, k * k)), wconst((e, 1)), wconst((k * k, n))]
    if use_se:
        red = p["w_se1"].shape[0]
        args += [p["w_se1"], p["w_se2"]]                              # (red,e),(e,red)
        in_specs += [wconst((red, e)), wconst((e, red))]
    args += [w_proj, b3]
    in_specs += [wconst((cout, e)), wconst((cout, 1))]

    kernel = functools.partial(
        _bneck_kernel, k=k, stride=stride, h=h, w=w, out_h=out_h, out_w=out_w,
        img_block=img_block, has_expand=has_expand, use_se=use_se,
        residual=residual)

    out = pl.pallas_call(
        kernel,
        out_shape=jax.ShapeDtypeStruct((num_steps, cout, n_out), jnp.float32),
        grid=(num_steps,),
        in_specs=in_specs,
        out_specs=pl.BlockSpec((None, cout, n_out), lambda i: (i, 0, 0)),
        compiler_params=pltpu.CompilerParams(
            dimension_semantics=("parallel",),
            vmem_limit_bytes=32 * 1024 * 1024),
    )(*args)

    out = (out.reshape(num_steps, cout, img_block, ohw)
              .transpose(0, 2, 1, 3)
              .reshape(b, cout, out_h, out_w))
    return out


# ----------------------------- pure-JAX reference ------------------------------

def bneck_reference(x, p, *, kernel_size, stride, use_se):
    def bn(y, params):
        gamma, beta, mean, var = params
        return ((y - mean[None, :, None, None])
                / jnp.sqrt(var + _BN_EPS)[None, :, None, None]
                * gamma[None, :, None, None] + beta[None, :, None, None])

    dn = ("NCHW", "OIHW", "NCHW")
    cin = x.shape[1]
    e = p["w_dw_oihw"].shape[0]
    cout = p["w_proj_oihw"].shape[0]
    residual = (cin == cout) and (stride == 1)
    k = kernel_size
    pad = k // 2

    y = x
    if cin != e:
        y = lax.conv_general_dilated(y, p["w_exp_oihw"], (1, 1), "VALID",
                                     dimension_numbers=dn)
        y = _hardswish(bn(y, p["bn1"]))
    y = lax.conv_general_dilated(y, p["w_dw_oihw"], (stride, stride),
                                 [(pad, pad), (pad, pad)],
                                 dimension_numbers=dn, feature_group_count=e)
    y = _hardswish(bn(y, p["bn2"]))
    if use_se:
        q = jnp.mean(y, axis=(2, 3))
        hid = jnp.maximum(q @ p["w_se1"].T, 0.0)
        a = _hardsigmoid(hid @ p["w_se2"].T)
        y = y * a[:, :, None, None]
    y = lax.conv_general_dilated(y, p["w_proj_oihw"], (1, 1), "VALID",
                                 dimension_numbers=dn)
    y = bn(y, p["bn3"])
    if residual:
        y = y + x
    return y


# ----------------------------- main ---------------------------------------------

if __name__ == "__main__":
    # Bneck(in_channels=8, expand_size=16, out_channels=8, kernel_size=3,
    #       stride=1, use_se=True, activation=nn.Hardswish())
    B, CIN, H, W = 2, 8, 16, 16
    E, COUT, K, STRIDE = 16, 8, 3, 1
    USE_SE = True
    RED = 4  # SE reduction

    key = jax.random.PRNGKey(0)
    keys = jax.random.split(key, 20)

    def make_bn(ks, c):
        gamma = 1.0 + 0.1 * jax.random.normal(ks[0], (c,), jnp.float32)
        beta = 0.1 * jax.random.normal(ks[1], (c,), jnp.float32)
        mean = 0.1 * jax.random.normal(ks[2], (c,), jnp.float32)
        var = jax.random.uniform(ks[3], (c,), jnp.float32, 0.5, 1.5)
        return (gamma, beta, mean, var)

    p = {
        "w_exp_oihw": 0.2 * jax.random.normal(keys[0], (E, CIN, 1, 1), jnp.float32),
        "bn1": make_bn(keys[1:5], E),
        "w_dw_oihw": 0.2 * jax.random.normal(keys[5], (E, 1, K, K), jnp.float32),
        "bn2": make_bn(keys[6:10], E),
        "w_se1": 0.3 * jax.random.normal(keys[10], (E // RED, E), jnp.float32),
        "w_se2": 0.3 * jax.random.normal(keys[11], (E, E // RED), jnp.float32),
        "w_proj_oihw": 0.2 * jax.random.normal(keys[12], (COUT, E, 1, 1), jnp.float32),
        "bn3": make_bn(keys[13:17], COUT),
    }

    x = jax.random.normal(keys[17], (B, CIN, H, W), jnp.float32)

    out = jax.block_until_ready(
        bneck_forward(x, p, kernel_size=K, stride=STRIDE, use_se=USE_SE))
    ref = jax.block_until_ready(
        bneck_reference(x, p, kernel_size=K, stride=STRIDE, use_se=USE_SE))

    assert out.shape == ref.shape, (out.shape, ref.shape)
    max_err = float(jnp.max(jnp.abs(out - ref)))
    assert jnp.allclose(out, ref, rtol=2e-4, atol=2e-4), max_err

    print("KERNEL_OK")
</pallas_src>

<mosaic_0001>
module attributes {stable_mosaic.version = 11 : i64} {
  func.func @_bneck_kernel(%arg0: i32, %arg1: memref<1x8x256xf32, #tpu.memory_space<vmem>>, %arg2: memref<16x8xf32, #tpu.memory_space<vmem>>, %arg3: memref<16x1xf32, #tpu.memory_space<vmem>>, %arg4: memref<16x9xf32, #tpu.memory_space<vmem>>, %arg5: memref<16x1xf32, #tpu.memory_space<vmem>>, %arg6: memref<9x256xf32, #tpu.memory_space<vmem>>, %arg7: memref<4x16xf32, #tpu.memory_space<vmem>>, %arg8: memref<16x4xf32, #tpu.memory_space<vmem>>, %arg9: memref<8x16xf32, #tpu.memory_space<vmem>>, %arg10: memref<8x1xf32, #tpu.memory_space<vmem>>, %arg11: memref<1x8x256xf32, #tpu.memory_space<vmem>>) attributes {dimension_semantics = [#tpu.dimension_semantics<parallel>], iteration_bounds = array<i64: 2>, scalar_prefetch = 0 : i64, scratch_operands = 0 : i64, tpu.core_type = #tpu.core_type<tc>, window_params = [{transform_indices = @transform_0, window_bounds = array<i64: 1, 8, 256>}, {pipeline_mode = #tpu.pipeline_mode<synchronous>, transform_indices = @transform_1, window_bounds = array<i64: 16, 8>}, {pipeline_mode = #tpu.pipeline_mode<synchronous>, transform_indices = @transform_2, window_bounds = array<i64: 16, 1>}, {pipeline_mode = #tpu.pipeline_mode<synchronous>, transform_indices = @transform_3, window_bounds = array<i64: 16, 9>}, {pipeline_mode = #tpu.pipeline_mode<synchronous>, transform_indices = @transform_4, window_bounds = array<i64: 16, 1>}, {pipeline_mode = #tpu.pipeline_mode<synchronous>, transform_indices = @transform_5, window_bounds = array<i64: 9, 256>}, {pipeline_mode = #tpu.pipeline_mode<synchronous>, transform_indices = @transform_6, window_bounds = array<i64: 4, 16>}, {pipeline_mode = #tpu.pipeline_mode<synchronous>, transform_indices = @transform_7, window_bounds = array<i64: 16, 4>}, {pipeline_mode = #tpu.pipeline_mode<synchronous>, transform_indices = @transform_8, window_bounds = array<i64: 8, 16>}, {pipeline_mode = #tpu.pipeline_mode<synchronous>, transform_indices = @transform_9, window_bounds = array<i64: 8, 1>}, {transform_indices = @transform_10, window_bounds = array<i64: 1, 8, 256>}]} {
    %c0 = arith.constant 0 : index
    %c0_0 = arith.constant 0 : index
    %0 = vector.load %arg2[%c0, %c0_0] : memref<16x8xf32, #tpu.memory_space<vmem>>, vector<16x8xf32>
    %c0_1 = arith.constant 0 : index
    %c0_2 = arith.constant 0 : index
    %c0_3 = arith.constant 0 : index
    %1 = vector.load %arg1[%c0_1, %c0_2, %c0_3] : memref<1x8x256xf32, #tpu.memory_space<vmem>>, vector<1x8x256xf32>
    %2 = vector.shape_cast %1 : vector<1x8x256xf32> to vector<8x256xf32>
    %cst = arith.constant dense<0.000000e+00> : vector<16x256xf32>
    %3 = tpu.matmul %0, %2, %cst {dimension_numbers = #tpu.dot_dimension_numbers<[1], [0], [0], [1], [0, 0, 1, 1], [], []>} : vector<16x8xf32>, vector<8x256xf32>, vector<16x256xf32> -> vector<16x256xf32>
    %c0_4 = arith.constant 0 : index
    %c0_5 = arith.constant 0 : index
    %4 = vector.load %arg3[%c0_4, %c0_5] : memref<16x1xf32, #tpu.memory_space<vmem>>, vector<16x1xf32>
    %5 = vector.broadcast %4 : vector<16x1xf32> to vector<16x256xf32>
    %6 = arith.addf %3, %5 : vector<16x256xf32>
    %cst_6 = arith.constant 3.000000e+00 : f32
    %7 = vector.broadcast %cst_6 : f32 to vector<16x256xf32>
    %8 = arith.addf %6, %7 : vector<16x256xf32>
    %cst_7 = arith.constant 0.000000e+00 : f32
    %cst_8 = arith.constant 6.000000e+00 : f32
    %9 = vector.broadcast %cst_7 : f32 to vector<16x256xf32>
    %10 = arith.maximumf %9, %8 : vector<16x256xf32>
    %11 = vector.broadcast %cst_8 : f32 to vector<16x256xf32>
    %12 = arith.minimumf %11, %10 : vector<16x256xf32>
    %13 = arith.mulf %6, %12 : vector<16x256xf32>
    %cst_9 = arith.constant 0.166666672 : f32
    %14 = vector.broadcast %cst_9 : f32 to vector<16x256xf32>
    %15 = arith.mulf %13, %14 : vector<16x256xf32>
    %cst_10 = arith.constant 0.000000e+00 : f32
    %16 = vector.broadcast %cst_10 : f32 to vector<16x256xf32>
    %c0_11 = arith.constant 0 : index
    %c0_12 = arith.constant 0 : index
    %17 = vector.load %arg4[%c0_11, %c0_12] : memref<16x9xf32, #tpu.memory_space<vmem>>, vector<16x1xf32>
    %c17_i32 = arith.constant 17 : i32
    %18 = tpu.dynamic_rotate %15 by %c17_i32 dim 1 : vector<16x256xf32>, i32 -> vector<16x256xf32>
    %c0_13 = arith.constant 0 : index
    %c0_14 = arith.constant 0 : index
    %19 = vector.load %arg6[%c0_13, %c0_14] : memref<9x256xf32, #tpu.memory_space<vmem>>, vector<1x256xf32>
    %20 = vector.broadcast %19 : vector<1x256xf32> to vector<16x256xf32>
    %21 = arith.mulf %18, %20 : vector<16x256xf32>
    %22 = vector.broadcast %17 : vector<16x1xf32> to vector<16x256xf32>
    %23 = arith.mulf %21, %22 : vector<16x256xf32>
    %24 = arith.addf %16, %23 : vector<16x256xf32>
    %c0_15 = arith.constant 0 : index
    %c1 = arith.constant 1 : index
    %25 = vector.load %arg4[%c0_15, %c1] : memref<16x9xf32, #tpu.memory_space<vmem>>, vector<16x1xf32>
    %c16_i32 = arith.constant 16 : i32
    %26 = tpu.dynamic_rotate %15 by %c16_i32 dim 1 : vector<16x256xf32>, i32 -> vector<16x256xf32>
    %c1_16 = arith.constant 1 : index
    %c0_17 = arith.constant 0 : index
    %27 = vector.load %arg6[%c1_16, %c0_17] : memref<9x256xf32, #tpu.memory_space<vmem>>, vector<1x256xf32>
    %28 = vector.broadcast %27 : vector<1x256xf32> to vector<16x256xf32>
    %29 = arith.mulf %26, %28 : vector<16x256xf32>
    %30 = vector.broadcast %25 : vector<16x1xf32> to vector<16x256xf32>
    %31 = arith.mulf %29, %30 : vector<16x256xf32>
    %32 = arith.addf %24, %31 : vector<16x256xf32>
    %c0_18 = arith.constant 0 : index
    %c2 = arith.constant 2 : index
    %33 = vector.load %arg4[%c0_18, %c2] : memref<16x9xf32, #tpu.memory_space<vmem>>, vector<16x1xf32>
    %c15_i32 = arith.constant 15 : i32
    %34 = tpu.dynamic_rotate %15 by %c15_i32 dim 1 : vector<16x256xf32>, i32 -> vector<16x256xf32>
    %c2_19 = arith.constant 2 : index
    %c0_20 = arith.constant 0 : index
    %35 = vector.load %arg6[%c2_19, %c0_20] : memref<9x256xf32, #tpu.memory_space<vmem>>, vector<1x256xf32>
    %36 = vector.broadcast %35 : vector<1x256xf32> to vector<16x256xf32>
    %37 = arith.mulf %34, %36 : vector<16x256xf32>
    %38 = vector.broadcast %33 : vector<16x1xf32> to vector<16x256xf32>
    %39 = arith.mulf %37, %38 : vector<16x256xf32>
    %40 = arith.addf %32, %39 : vector<16x256xf32>
    %c0_21 = arith.constant 0 : index
    %c3 = arith.constant 3 : index
    %41 = vector.load %arg4[%c0_21, %c3] : memref<16x9xf32, #tpu.memory_space<vmem>>, vector<16x1xf32>
    %c1_i32 = arith.constant 1 : i32
    %42 = tpu.dynamic_rotate %15 by %c1_i32 dim 1 : vector<16x256xf32>, i32 -> vector<16x256xf32>
    %c3_22 = arith.constant 3 : index
    %c0_23 = arith.constant 0 : index
    %43 = vector.load %arg6[%c3_22, %c0_23] : memref<9x256xf32, #tpu.memory_space<vmem>>, vector<1x256xf32>
    %44 = vector.broadcast %43 : vector<1x256xf32> to vector<16x256xf32>
    %45 = arith.mulf %42, %44 : vector<16x256xf32>
    %46 = vector.broadcast %41 : vector<16x1xf32> to vector<16x256xf32>
    %47 = arith.mulf %45, %46 : vector<16x256xf32>
    %48 = arith.addf %40, %47 : vector<16x256xf32>
    %c0_24 = arith.constant 0 : index
    %c4 = arith.constant 4 : index
    %49 = vector.load %arg4[%c0_24, %c4] : memref<16x9xf32, #tpu.memory_space<vmem>>, vector<16x1xf32>
    %50 = vector.broadcast %49 : vector<16x1xf32> to vector<16x256xf32>
    %51 = arith.mulf %15, %50 : vector<16x256xf32>
    %52 = arith.addf %48, %51 : vector<16x256xf32>
    %c0_25 = arith.constant 0 : index
    %c5 = arith.constant 5 : index
    %53 = vector.load %arg4[%c0_25, %c5] : memref<16x9xf32, #tpu.memory_space<vmem>>, vector<16x1xf32>
    %c255_i32 = arith.constant 255 : i32
    %54 = tpu.dynamic_rotate %15 by %c255_i32 dim 1 : vector<16x256xf32>, i32 -> vector<16x256xf32>
    %c5_26 = arith.constant 5 : index
    %c0_27 = arith.constant 0 : index
    %55 = vector.load %arg6[%c5_26, %c0_27] : memref<9x256xf32, #tpu.memory_space<vmem>>, vector<1x256xf32>
    %56 = vector.broadcast %55 : vector<1x256xf32> to vector<16x256xf32>
    %57 = arith.mulf %54, %56 : vector<16x256xf32>
    %58 = vector.broadcast %53 : vector<16x1xf32> to vector<16x256xf32>
    %59 = arith.mulf %57, %58 : vector<16x256xf32>
    %60 = arith.addf %52, %59 : vector<16x256xf32>
    %c0_28 = arith.constant 0 : index
    %c6 = arith.constant 6 : index
    %61 = vector.load %arg4[%c0_28, %c6] : memref<16x9xf32, #tpu.memory_space<vmem>>, vector<16x1xf32>
    %c241_i32 = arith.constant 241 : i32
    %62 = tpu.dynamic_rotate %15 by %c241_i32 dim 1 : vector<16x256xf32>, i32 -> vector<16x256xf32>
    %c6_29 = arith.constant 6 : index
    %c0_30 = arith.constant 0 : index
    %63 = vector.load %arg6[%c6_29, %c0_30] : memref<9x256xf32, #tpu.memory_space<vmem>>, vector<1x256xf32>
    %64 = vector.broadcast %63 : vector<1x256xf32> to vector<16x256xf32>
    %65 = arith.mulf %62, %64 : vector<16x256xf32>
    %66 = vector.broadcast %61 : vector<16x1xf32> to vector<16x256xf32>
    %67 = arith.mulf %65, %66 : vector<16x256xf32>
    %68 = arith.addf %60, %67 : vector<16x256xf32>
    %c0_31 = arith.constant 0 : index
    %c7 = arith.constant 7 : index
    %69 = vector.load %arg4[%c0_31, %c7] : memref<16x9xf32, #tpu.memory_space<vmem>>, vector<16x1xf32>
    %c240_i32 = arith.constant 240 : i32
    %70 = tpu.dynamic_rotate %15 by %c240_i32 dim 1 : vector<16x256xf32>, i32 -> vector<16x256xf32>
    %c7_32 = arith.constant 7 : index
    %c0_33 = arith.constant 0 : index
    %71 = vector.load %arg6[%c7_32, %c0_33] : memref<9x256xf32, #tpu.memory_space<vmem>>, vector<1x256xf32>
    %72 = vector.broadcast %71 : vector<1x256xf32> to vector<16x256xf32>
    %73 = arith.mulf %70, %72 : vector<16x256xf32>
    %74 = vector.broadcast %69 : vector<16x1xf32> to vector<16x256xf32>
    %75 = arith.mulf %73, %74 : vector<16x256xf32>
    %76 = arith.addf %68, %75 : vector<16x256xf32>
    %c0_34 = arith.constant 0 : index
    %c8 = arith.constant 8 : index
    %77 = vector.load %arg4[%c0_34, %c8] : memref<16x9xf32, #tpu.memory_space<vmem>>, vector<16x1xf32>
    %c239_i32 = arith.constant 239 : i32
    %78 = tpu.dynamic_rotate %15 by %c239_i32 dim 1 : vector<16x256xf32>, i32 -> vector<16x256xf32>
    %c8_35 = arith.constant 8 : index
    %c0_36 = arith.constant 0 : index
    %79 = vector.load %arg6[%c8_35, %c0_36] : memref<9x256xf32, #tpu.memory_space<vmem>>, vector<1x256xf32>
    %80 = vector.broadcast %79 : vector<1x256xf32> to vector<16x256xf32>
    %81 = arith.mulf %78, %80 : vector<16x256xf32>
    %82 = vector.broadcast %77 : vector<16x1xf32> to vector<16x256xf32>
    %83 = arith.mulf %81, %82 : vector<16x256xf32>
    %84 = arith.addf %76, %83 : vector<16x256xf32>
    %c0_37 = arith.constant 0 : index
    %c0_38 = arith.constant 0 : index
    %85 = vector.load %arg5[%c0_37, %c0_38] : memref<16x1xf32, #tpu.memory_space<vmem>>, vector<16x1xf32>
    %86 = vector.broadcast %85 : vector<16x1xf32> to vector<16x256xf32>
    %87 = arith.addf %84, %86 : vector<16x256xf32>
    %cst_39 = arith.constant 3.000000e+00 : f32
    %88 = vector.broadcast %cst_39 : f32 to vector<16x256xf32>
    %89 = arith.addf %87, %88 : vector<16x256xf32>
    %cst_40 = arith.constant 0.000000e+00 : f32
    %cst_41 = arith.constant 6.000000e+00 : f32
    %90 = vector.broadcast %cst_40 : f32 to vector<16x256xf32>
    %91 = arith.maximumf %90, %89 : vector<16x256xf32>
    %92 = vector.broadcast %cst_41 : f32 to vector<16x256xf32>
    %93 = arith.minimumf %92, %91 : vector<16x256xf32>
    %94 = arith.mulf %87, %93 : vector<16x256xf32>
    %cst_42 = arith.constant 0.166666672 : f32
    %95 = vector.broadcast %cst_42 : f32 to vector<16x256xf32>
    %96 = arith.mulf %94, %95 : vector<16x256xf32>
    %cst_43 = arith.constant dense<0.000000e+00> : vector<16xf32>
    %97 = vector.multi_reduction <add>, %96, %cst_43 [1] : vector<16x256xf32> to vector<16xf32>
    %98 = vector.shape_cast %97 : vector<16xf32> to vector<16x1xf32>
    %cst_44 = arith.constant 3.906250e-03 : f32
    %99 = vector.broadcast %cst_44 : f32 to vector<16x1xf32>
    %100 = arith.mulf %98, %99 : vector<16x1xf32>
    %c0_45 = arith.constant 0 : index
    %c0_46 = arith.constant 0 : index
    %101 = vector.load %arg7[%c0_45, %c0_46] : memref<4x16xf32, #tpu.memory_space<vmem>>, vector<4x16xf32>
    %cst_47 = arith.constant dense<0.000000e+00> : vector<4x1xf32>
    %102 = tpu.matmul %101, %100, %cst_47 {dimension_numbers = #tpu.dot_dimension_numbers<[1], [0], [0], [1], [0, 0, 1, 1], [], []>} : vector<4x16xf32>, vector<16x1xf32>, vector<4x1xf32> -> vector<4x1xf32>
    %cst_48 = arith.constant 0.000000e+00 : f32
    %103 = vector.broadcast %cst_48 : f32 to vector<4x1xf32>
    %104 = arith.maximumf %102, %103 : vector<4x1xf32>
    %c0_49 = arith.constant 0 : index
    %c0_50 = arith.constant 0 : index
    %105 = vector.load %arg8[%c0_49, %c0_50] : memref<16x4xf32, #tpu.memory_space<vmem>>, vector<16x4xf32>
    %cst_51 = arith.constant dense<0.000000e+00> : vector<16x1xf32>
    %106 = tpu.matmul %105, %104, %cst_51 {dimension_numbers = #tpu.dot_dimension_numbers<[1], [0], [0], [1], [0, 0, 1, 1], [], []>} : vector<16x4xf32>, vector<4x1xf32>, vector<16x1xf32> -> vector<16x1xf32>
    %cst_52 = arith.constant 3.000000e+00 : f32
    %107 = vector.broadcast %cst_52 : f32 to vector<16x1xf32>
    %108 = arith.addf %106, %107 : vector<16x1xf32>
    %cst_53 = arith.constant 0.000000e+00 : f32
    %cst_54 = arith.constant 6.000000e+00 : f32
    %109 = vector.broadcast %cst_53 : f32 to vector<16x1xf32>
    %110 = arith.maximumf %109, %108 : vector<16x1xf32>
    %111 = vector.broadcast %cst_54 : f32 to vector<16x1xf32>
    %112 = arith.minimumf %111, %110 : vector<16x1xf32>
    %cst_55 = arith.constant 0.166666672 : f32
    %113 = vector.broadcast %cst_55 : f32 to vector<16x1xf32>
    %114 = arith.mulf %112, %113 : vector<16x1xf32>
    %115 = vector.broadcast %114 : vector<16x1xf32> to vector<16x256xf32>
    %116 = arith.mulf %96, %115 : vector<16x256xf32>
    %c0_56 = arith.constant 0 : index
    %c0_57 = arith.constant 0 : index
    %117 = vector.load %arg9[%c0_56, %c0_57] : memref<8x16xf32, #tpu.memory_space<vmem>>, vector<8x16xf32>
    %cst_58 = arith.constant dense<0.000000e+00> : vector<8x256xf32>
    %118 = tpu.matmul %117, %116, %cst_58 {dimension_numbers = #tpu.dot_dimension_numbers<[1], [0], [0], [1], [0, 0, 1, 1], [], []>} : vector<8x16xf32>, vector<16x256xf32>, vector<8x256xf32> -> vector<8x256xf32>
    %c0_59 = arith.constant 0 : index
    %c0_60 = arith.constant 0 : index
    %119 = vector.load %arg10[%c0_59, %c0_60] : memref<8x1xf32, #tpu.memory_space<vmem>>, vector<8x1xf32>
    %120 = vector.broadcast %119 : vector<8x1xf32> to vector<8x256xf32>
    %121 = arith.addf %118, %120 : vector<8x256xf32>
    %c0_61 = arith.constant 0 : index
    %c0_62 = arith.constant 0 : index
    %c0_63 = arith.constant 0 : index
    %122 = vector.load %arg1[%c0_61, %c0_62, %c0_63] : memref<1x8x256xf32, #tpu.memory_space<vmem>>, vector<1x8x256xf32>
    %123 = vector.shape_cast %122 : vector<1x8x256xf32> to vector<8x256xf32>
    %124 = arith.addf %121, %123 : vector<8x256xf32>
    %c0_64 = arith.constant 0 : index
    %c0_65 = arith.constant 0 : index
    %c0_66 = arith.constant 0 : index
    %125 = vector.load %arg11[%c0_64, %c0_65, %c0_66] : memref<1x8x256xf32, #tpu.memory_space<vmem>>, vector<1x8x256xf32>
    %126 = vector.shape_cast %125 : vector<1x8x256xf32> to vector<8x256xf32>
    %127 = vector.shape_cast %124 : vector<8x256xf32> to vector<1x8x256xf32>
    tpu.vector_store %arg11[%c0_64, %c0_65, %c0_66], %127 {strides = array<i32>} : memref<1x8x256xf32, #tpu.memory_space<vmem>>, vector<1x8x256xf32>,
    return
  }
  func.func @transform_0(%arg0: i32) -> (i32, i32, i32) {
    %c0_i32 = arith.constant 0 : i32
    %c0_i32_0 = arith.constant 0 : i32
    %c0_i32_1 = arith.constant 0 : i32
    return %arg0, %c0_i32, %c0_i32_0 : i32, i32, i32
  }
  func.func @transform_1(%arg0: i32) -> (i32, i32) {
    %c0_i32 = arith.constant 0 : i32
    %c0_i32_0 = arith.constant 0 : i32
    %c0_i32_1 = arith.constant 0 : i32
    return %c0_i32, %c0_i32_0 : i32, i32
  }
  func.func @transform_2(%arg0: i32) -> (i32, i32) {
    %c0_i32 = arith.constant 0 : i32
    %c0_i32_0 = arith.constant 0 : i32
    %c0_i32_1 = arith.constant 0 : i32
    return %c0_i32, %c0_i32_0 : i32, i32
  }
  func.func @transform_3(%arg0: i32) -> (i32, i32) {
    %c0_i32 = arith.constant 0 : i32
    %c0_i32_0 = arith.constant 0 : i32
    %c0_i32_1 = arith.constant 0 : i32
    return %c0_i32, %c0_i32_0 : i32, i32
  }
  func.func @transform_4(%arg0: i32) -> (i32, i32) {
    %c0_i32 = arith.constant 0 : i32
    %c0_i32_0 = arith.constant 0 : i32
    %c0_i32_1 = arith.constant 0 : i32
    return %c0_i32, %c0_i32_0 : i32, i32
  }
  func.func @transform_5(%arg0: i32) -> (i32, i32) {
    %c0_i32 = arith.constant 0 : i32
    %c0_i32_0 = arith.constant 0 : i32
    %c0_i32_1 = arith.constant 0 : i32
    return %c0_i32, %c0_i32_0 : i32, i32
  }
  func.func @transform_6(%arg0: i32) -> (i32, i32) {
    %c0_i32 = arith.constant 0 : i32
    %c0_i32_0 = arith.constant 0 : i32
    %c0_i32_1 = arith.constant 0 : i32
    return %c0_i32, %c0_i32_0 : i32, i32
  }
  func.func @transform_7(%arg0: i32) -> (i32, i32) {
    %c0_i32 = arith.constant 0 : i32
    %c0_i32_0 = arith.constant 0 : i32
    %c0_i32_1 = arith.constant 0 : i32
    return %c0_i32, %c0_i32_0 : i32, i32
  }
  func.func @transform_8(%arg0: i32) -> (i32, i32) {
    %c0_i32 = arith.constant 0 : i32
    %c0_i32_0 = arith.constant 0 : i32
    %c0_i32_1 = arith.constant 0 : i32
    return %c0_i32, %c0_i32_0 : i32, i32
  }
  func.func @transform_9(%arg0: i32) -> (i32, i32) {
    %c0_i32 = arith.constant 0 : i32
    %c0_i32_0 = arith.constant 0 : i32
    %c0_i32_1 = arith.constant 0 : i32
    return %c0_i32, %c0_i32_0 : i32, i32
  }
  func.func @transform_10(%arg0: i32) -> (i32, i32, i32) {
    %c0_i32 = arith.constant 0 : i32
    %c0_i32_0 = arith.constant 0 : i32
    %c0_i32_1 = arith.constant 0 : i32
    return %arg0, %c0_i32, %c0_i32_0 : i32, i32, i32
  }
}

</mosaic_0001>

<llo_original>
// kernel: bneck_forward.1
$region0: #{bneck_forward.1}
  #allocation0 [shape = 'u32[]', space=smem, size = 0x4, offset = 0x4, fixed_abs, tag = 'smem constant byte address 0x4 - core index']
  #allocation1 [shape = 'u32[144,128]{1,0:T(1,128)}', space=vmem, size = 0x12000, scoped, tag = 'internal scratch']
  %s0 = inlined_call_operand.vmem [shape: f32[2,8,256], index: 0, kind: input, shape index: {}]
  %s1 = inlined_call_operand.vmem [shape: f32[16,8], index: 1, kind: input, shape index: {}]
  %s2 = inlined_call_operand.vmem [shape: f32[16,1], index: 2, kind: input, shape index: {}]
  %s3 = inlined_call_operand.vmem [shape: f32[16,9], index: 3, kind: input, shape index: {}]
  %s4 = inlined_call_operand.vmem [shape: f32[16,1], index: 4, kind: input, shape index: {}]
  %s5 = inlined_call_operand.vmem [shape: f32[9,256], index: 5, kind: input, shape index: {}]
  %s6 = inlined_call_operand.vmem [shape: f32[4,16], index: 6, kind: input, shape index: {}]
  %s7 = inlined_call_operand.vmem [shape: f32[16,4], index: 7, kind: input, shape index: {}]
  %s8 = inlined_call_operand.vmem [shape: f32[8,16], index: 8, kind: input, shape index: {}]
  %s9 = inlined_call_operand.vmem [shape: f32[8,1], index: 9, kind: input, shape index: {}]
  %s10 = inlined_call_operand.vmem [shape: f32[2,8,256], index: 10, kind: output, shape index: {}]
  %s11 = sld [smem:[#allocation0]]
  $region73: #{bneck_forward.1} parent=0
    _
  %s13 = ssub.s32 1, %s11
  %s14 = scalar_select 0, %s13, %s11
  loop: start=0, step=1, limit=4
  $region2: #{bneck_forward.1} parent=0 // loop_pre_header
    _
  $region3: #{bneck_forward.1} parent=0 // loop_header
    %s16 = sphi 0, %s20
    %p17 = scmp.ge.s32.totalorder %s16, 4
    %s26 = sphi 0, %s28
    %s29 = sphi 0, %s26
    %s30 = sphi 0, %s29
    %s46 = sphi 0, %s30
    %s50 = sphi 0, %s50
    %s52 = sphi 0, %s50
    %s53 = sphi 0, %s52
    %s67 = sphi 0, %s53
    %s71 = sphi 0, %s71
    %s73 = sphi 0, %s71
    %s74 = sphi 0, %s73
    %s88 = sphi 0, %s74
    %s92 = sphi 0, %s92
    %s94 = sphi 0, %s92
    %s95 = sphi 0, %s94
    %s109 = sphi 0, %s95
    %s113 = sphi 0, %s113
    %s115 = sphi 0, %s113
    %s116 = sphi 0, %s115
    %s130 = sphi 0, %s116
    %s134 = sphi 0, %s134
    %s136 = sphi 0, %s134
    %s137 = sphi 0, %s136
    %s151 = sphi 0, %s137
    %s155 = sphi 0, %s155
    %s157 = sphi 0, %s155
    %s158 = sphi 0, %s157
    %s172 = sphi 0, %s158
    %s176 = sphi 0, %s176
    %s178 = sphi 0, %s176
    %s179 = sphi 0, %s178
    %s193 = sphi 0, %s179
    %s197 = sphi 0, %s197
    %s199 = sphi 0, %s197
    %s200 = sphi 0, %s199
    %s214 = sphi 0, %s200
    %s218 = sphi 0, %s218
    %s220 = sphi 0, %s218
    %s221 = sphi 0, %s220
    %s235 = sphi 0, %s221
    %s241 = sphi 0, %s243
    %s244 = sphi 0, %s241
    %s245 = sphi 0, %s244
    %s261 = sphi 0, %s245
  $region4: #{bneck_forward.1} parent=0 // loop_header_branch
    %19 = sbr.rel (%p17) target = $region8
  $region5: #{bneck_forward.1} parent=0 // loop_body
    %s21 = ssub.s32 %s16, 1
    %s22 = ssub.s32 %s16, 2
    %s23 = sadd.s32 %s16, 1
    %s24 = ssub.s32 %s16, %s23
    %p25 = scmp.eq.s32.totalorder %s24, 0
    %s27 = sadd.s32 %s26, 1
    %s28 = scalar_select %p25, %s26, %s27
    %p31 = pneg %p25
    %p32 = scmp.eq.s32.totalorder %s16, 1
    %p33 = por %p31, %p32
    %p34 = scmp.ne.s32.totalorder %s26, %s29
    %p35 = scmp.eq.s32.totalorder %s16, 0
    %p36 = por %p34, %p35
    %p37 = scmp.ne.s32.totalorder %s26, %s29
    %p38 = scmp.eq.s32.totalorder %s21, 1
    %p39 = por %p37, %p38
    %p40 = scmp.ne.s32.totalorder %s29, %s30
    %p41 = scmp.eq.s32.totalorder %s21, 0
    %p42 = por %p40, %p41
    %p43 = scmp.ne.s32.totalorder %s29, %s30
    %p44 = scmp.eq.s32.totalorder %s22, 1
    %p45 = por %p43, %p44
    %p47 = scmp.ne.s32.totalorder %s30, %s46
    %p48 = scmp.eq.s32.totalorder %s22, 0
    %p49 = por %p47, %p48
    %s51 = sadd.s32 %s50, 1
    %p54 = scmp.eq.s32.totalorder %s16, 1
    %p55 = scmp.ne.s32.totalorder %s50, %s52
    %p56 = scmp.eq.s32.totalorder %s16, 0
    %p57 = por %p55, %p56
    %p58 = scmp.ne.s32.totalorder %s50, %s52
    %p59 = scmp.eq.s32.totalorder %s21, 1
    %p60 = por %p58, %p59
    %p61 = scmp.ne.s32.totalorder %s52, %s53
    %p62 = scmp.eq.s32.totalorder %s21, 0
    %p63 = por %p61, %p62
    %p64 = scmp.ne.s32.totalorder %s52, %s53
    %p65 = scmp.eq.s32.totalorder %s22, 1
    %p66 = por %p64, %p65
    %p68 = scmp.ne.s32.totalorder %s53, %s67
    %p69 = scmp.eq.s32.totalorder %s22, 0
    %p70 = por %p68, %p69
    %s72 = sadd.s32 %s71, 1
    %p75 = scmp.eq.s32.totalorder %s16, 1
    %p76 = scmp.ne.s32.totalorder %s71, %s73
    %p77 = scmp.eq.s32.totalorder %s16, 0
    %p78 = por %p76, %p77
    %p79 = scmp.ne.s32.totalorder %s71, %s73
    %p80 = scmp.eq.s32.totalorder %s21, 1
    %p81 = por %p79, %p80
    %p82 = scmp.ne.s32.totalorder %s73, %s74
    %p83 = scmp.eq.s32.totalorder %s21, 0
    %p84 = por %p82, %p83
    %p85 = scmp.ne.s32.totalorder %s73, %s74
    %p86 = scmp.eq.s32.totalorder %s22, 1
    %p87 = por %p85, %p86
    %p89 = scmp.ne.s32.totalorder %s74, %s88
    %p90 = scmp.eq.s32.totalorder %s22, 0
    %p91 = por %p89, %p90
    %s93 = sadd.s32 %s92, 1
    %p96 = scmp.eq.s32.totalorder %s16, 1
    %p97 = scmp.ne.s32.totalorder %s92, %s94
    %p98 = scmp.eq.s32.totalorder %s16, 0
    %p99 = por %p97, %p98
    %p100 = scmp.ne.s32.totalorder %s92, %s94
    %p101 = scmp.eq.s32.totalorder %s21, 1
    %p102 = por %p100, %p101
    %p103 = scmp.ne.s32.totalorder %s94, %s95
    %p104 = scmp.eq.s32.totalorder %s21, 0
    %p105 = por %p103, %p104
    %p106 = scmp.ne.s32.totalorder %s94, %s95
    %p107 = scmp.eq.s32.totalorder %s22, 1
    %p108 = por %p106, %p107
    %p110 = scmp.ne.s32.totalorder %s95, %s109
    %p111 = scmp.eq.s32.totalorder %s22, 0
    %p112 = por %p110, %p111
    %s114 = sadd.s32 %s113, 1
    %p117 = scmp.eq.s32.totalorder %s16, 1
    %p118 = scmp.ne.s32.totalorder %s113, %s115
    %p119 = scmp.eq.s32.totalorder %s16, 0
    %p120 = por %p118, %p119
    %p121 = scmp.ne.s32.totalorder %s113, %s115
    %p122 = scmp.eq.s32.totalorder %s21, 1
    %p123 = por %p121, %p122
    %p124 = scmp.ne.s32.totalorder %s115, %s116
    %p125 = scmp.eq.s32.totalorder %s21, 0
    %p126 = por %p124, %p125
    %p127 = scmp.ne.s32.totalorder %s115, %s116
    %p128 = scmp.eq.s32.totalorder %s22, 1
    %p129 = por %p127, %p128
    %p131 = scmp.ne.s32.totalorder %s116, %s130
    %p132 = scmp.eq.s32.totalorder %s22, 0
    %p133 = por %p131, %p132
    %s135 = sadd.s32 %s134, 1
    %p138 = scmp.eq.s32.totalorder %s16, 1
    %p139 = scmp.ne.s32.totalorder %s134, %s136
    %p140 = scmp.eq.s32.totalorder %s16, 0
    %p141 = por %p139, %p140
    %p142 = scmp.ne.s32.totalorder %s134, %s136
    %p143 = scmp.eq.s32.totalorder %s21, 1
    %p144 = por %p142, %p143
    %p145 = scmp.ne.s32.totalorder %s136, %s137
    %p146 = scmp.eq.s32.totalorder %s21, 0
    %p147 = por %p145, %p146
    %p148 = scmp.ne.s32.totalorder %s136, %s137
    %p149 = scmp.eq.s32.totalorder %s22, 1
    %p150 = por %p148, %p149
    %p152 = scmp.ne.s32.totalorder %s137, %s151
    %p153 = scmp.eq.s32.totalorder %s22, 0
    %p154 = por %p152, %p153
    %s156 = sadd.s32 %s155, 1
    %p159 = scmp.eq.s32.totalorder %s16, 1
    %p160 = scmp.ne.s32.totalorder %s155, %s157
    %p161 = scmp.eq.s32.totalorder %s16, 0
    %p162 = por %p160, %p161
    %p163 = scmp.ne.s32.totalorder %s155, %s157
    %p164 = scmp.eq.s32.totalorder %s21, 1
    %p165 = por %p163, %p164
    %p166 = scmp.ne.s32.totalorder %s157, %s158
    %p167 = scmp.eq.s32.totalorder %s21, 0
    %p168 = por %p166, %p167
    %p169 = scmp.ne.s32.totalorder %s157, %s158
    %p170 = scmp.eq.s32.totalorder %s22, 1
    %p171 = por %p169, %p170
    %p173 = scmp.ne.s32.totalorder %s158, %s172
    %p174 = scmp.eq.s32.totalorder %s22, 0
    %p175 = por %p173, %p174
    %s177 = sadd.s32 %s176, 1
    %p180 = scmp.eq.s32.totalorder %s16, 1
    %p181 = scmp.ne.s32.totalorder %s176, %s178
    %p182 = scmp.eq.s32.totalorder %s16, 0
    %p183 = por %p181, %p182
    %p184 = scmp.ne.s32.totalorder %s176, %s178
    %p185 = scmp.eq.s32.totalorder %s21, 1
    %p186 = por %p184, %p185
    %p187 = scmp.ne.s32.totalorder %s178, %s179
    %p188 = scmp.eq.s32.totalorder %s21, 0
    %p189 = por %p187, %p188
    %p190 = scmp.ne.s32.totalorder %s178, %s179
    %p191 = scmp.eq.s32.totalorder %s22, 1
    %p192 = por %p190, %p191
    %p194 = scmp.ne.s32.totalorder %s179, %s193
    %p195 = scmp.eq.s32.totalorder %s22, 0
    %p196 = por %p194, %p195
    %s198 = sadd.s32 %s197, 1
    %p201 = scmp.eq.s32.totalorder %s16, 1
    %p202 = scmp.ne.s32.totalorder %s197, %s199
    %p203 = scmp.eq.s32.totalorder %s16, 0
    %p204 = por %p202, %p203
    %p205 = scmp.ne.s32.totalorder %s197, %s199
    %p206 = scmp.eq.s32.totalorder %s21, 1
    %p207 = por %p205, %p206
    %p208 = scmp.ne.s32.totalorder %s199, %s200
    %p209 = scmp.eq.s32.totalorder %s21, 0
    %p210 = por %p208, %p209
    %p211 = scmp.ne.s32.totalorder %s199, %s200
    %p212 = scmp.eq.s32.totalorder %s22, 1
    %p213 = por %p211, %p212
    %p215 = scmp.ne.s32.totalorder %s200, %s214
    %p216 = scmp.eq.s32.totalorder %s22, 0
    %p217 = por %p215, %p216
    %s219 = sadd.s32 %s218, 1
    %p222 = scmp.eq.s32.totalorder %s16, 1
    %p223 = scmp.ne.s32.totalorder %s218, %s220
    %p224 = scmp.eq.s32.totalorder %s16, 0
    %p225 = por %p223, %p224
    %p226 = scmp.ne.s32.totalorder %s218, %s220
    %p227 = scmp.eq.s32.totalorder %s21, 1
    %p228 = por %p226, %p227
    %p229 = scmp.ne.s32.totalorder %s220, %s221
    %p230 = scmp.eq.s32.totalorder %s21, 0
    %p231 = por %p229, %p230
    %p232 = scmp.ne.s32.totalorder %s220, %s221
    %p233 = scmp.eq.s32.totalorder %s22, 1
    %p234 = por %p232, %p233
    %p236 = scmp.ne.s32.totalorder %s221, %s235
    %p237 = scmp.eq.s32.totalorder %s22, 0
    %p238 = por %p236, %p237
    %s239 = ssub.s32 %s16, %s23
    %p240 = scmp.eq.s32.totalorder %s239, 0
    %s242 = sadd.s32 %s241, 1
    %s243 = scalar_select %p240, %s241, %s242
    %p246 = pneg %p240
    %p247 = scmp.eq.s32.totalorder %s16, 1
    %p248 = por %p246, %p247
    %p249 = scmp.ne.s32.totalorder %s241, %s244
    %p250 = scmp.eq.s32.totalorder %s16, 0
    %p251 = por %p249, %p250
    %p252 = scmp.ne.s32.totalorder %s241, %s244
    %p253 = scmp.eq.s32.totalorder %s21, 1
    %p254 = por %p252, %p253
    %p255 = scmp.ne.s32.totalorder %s244, %s245
    %p256 = scmp.eq.s32.totalorder %s21, 0
    %p257 = por %p255, %p256
    %p258 = scmp.ne.s32.totalorder %s244, %s245
    %p259 = scmp.eq.s32.totalorder %s22, 1
    %p260 = por %p258, %p259
    %p262 = scmp.ne.s32.totalorder %s245, %s261
    %p263 = scmp.eq.s32.totalorder %s22, 0
    %p264 = por %p262, %p263
    %p265 = scmp.le.s32.totalorder 1, %s16
    %p266 = scmp.lt.s32.totalorder %s16, 3
    %p267 = pnand %p265, %p266
    %p268 = pneg %p267
    // Predicated region
    $region9: #{bneck_forward.1} parent=5 // pred_check
      _
    $region10: #{bneck_forward.1} parent=5 // pred_check_branch
      %270 = sbr.rel (%p267) target = $region12
    $region11: #{bneck_forward.1} parent=5 // pred_region
      %s271 = ssub.s32 %s16, 1
      // Predicated region
      $region13: #{bneck_forward.1} parent=11 // pred_check
        %p272 = pneg %p63
      $region14: #{bneck_forward.1} parent=11 // pred_check_branch
        %274 = sbr.rel (%p272) target = $region16
      $region15: #{bneck_forward.1} parent=11 // pred_region
        _
      $region16: #{bneck_forward.1} parent=11 // pred_fallthru
        _
      // Predicated region
      $region17: #{bneck_forward.1} parent=11 // pred_check
        %p275 = pneg %p84
      $region18: #{bneck_forward.1} parent=11 // pred_check_branch
        %277 = sbr.rel (%p275) target = $region20
      $region19: #{bneck_forward.1} parent=11 // pred_region
        _
      $region20: #{bneck_forward.1} parent=11 // pred_fallthru
        _
      // Predicated region
      $region21: #{bneck_forward.1} parent=11 // pred_check
        %p278 = pneg %p105
      $region22: #{bneck_forward.1} parent=11 // pred_check_branch
        %280 = sbr.rel (%p278) target = $region24
      $region23: #{bneck_forward.1} parent=11 // pred_region
        _
      $region24: #{bneck_forward.1} parent=11 // pred_fallthru
        _
      // Predicated region
      $region25: #{bneck_forward.1} parent=11 // pred_check
        %p281 = pneg %p126
      $region26: #{bneck_forward.1} parent=11 // pred_check_branch
        %283 = sbr.rel (%p281) target = $region28
      $region27: #{bneck_forward.1} parent=11 // pred_region
        _
      $region28: #{bneck_forward.1} parent=11 // pred_fallthru
        _
      // Predicated region
      $region29: #{bneck_forward.1} parent=11 // pred_check
        %p284 = pneg %p147
      $region30: #{bneck_forward.1} parent=11 // pred_check_branch
        %286 = sbr.rel (%p284) target = $region32
      $region31: #{bneck_forward.1} parent=11 // pred_region
        _
      $region32: #{bneck_forward.1} parent=11 // pred_fallthru
        _
      // Predicated region
      $region33: #{bneck_forward.1} parent=11 // pred_check
        %p287 = pneg %p168
      $region34: #{bneck_forward.1} parent=11 // pred_check_branch
        %289 = sbr.rel (%p287) target = $region36
      $region35: #{bneck_forward.1} parent=11 // pred_region
        _
      $region36: #{bneck_forward.1} parent=11 // pred_fallthru
        _
      // Predicated region
      $region37: #{bneck_forward.1} parent=11 // pred_check
        %p290 = pneg %p189
      $region38: #{bneck_forward.1} parent=11 // pred_check_branch
        %292 = sbr.rel (%p290) target = $region40
      $region39: #{bneck_forward.1} parent=11 // pred_region
        _
      $region40: #{bneck_forward.1} parent=11 // pred_fallthru
        _
      // Predicated region
      $region41: #{bneck_forward.1} parent=11 // pred_check
        %p293 = pneg %p210
      $region42: #{bneck_forward.1} parent=11 // pred_check_branch
        %295 = sbr.rel (%p293) target = $region44
      $region43: #{bneck_forward.1} parent=11 // pred_region
        _
      $region44: #{bneck_forward.1} parent=11 // pred_fallthru
        _
      // Predicated region
      $region45: #{bneck_forward.1} parent=11 // pred_check
        %p296 = pneg %p231
      $region46: #{bneck_forward.1} parent=11 // pred_check_branch
        %298 = sbr.rel (%p296) target = $region48
      $region47: #{bneck_forward.1} parent=11 // pred_region
        _
      $region48: #{bneck_forward.1} parent=11 // pred_fallthru
        _
    $region12: #{bneck_forward.1} parent=5 // pred_fallthru
      _
    %p299 = scmp.lt.s32.totalorder %s16, 2
    // Predicated region
    $region49: #{bneck_forward.1} parent=5 // pred_check
      %p300 = pneg %p299
    $region50: #{bneck_forward.1} parent=5 // pred_check_branch
      %302 = sbr.rel (%p300) target = $region52
    $region51: #{bneck_forward.1} parent=5 // pred_region
      // Predicated region
      $region53: #{bneck_forward.1} parent=51 // pred_check
        %p303 = pneg %p36
      $region54: #{bneck_forward.1} parent=51 // pred_check_branch
        %305 = sbr.rel (%p303) target = $region56
      $region55: #{bneck_forward.1} parent=51 // pred_region
        %p306 = scmp.lt.s32.totalorder %s16, 1
        %s307 = scalar_select %p306, %s16, 1
        %s308 = smul.addr %s307, 2
        %s309 = smul.addr %s308, 8
        %s310 = scalar_lea.vmem %s0, %s309
      $region56: #{bneck_forward.1} parent=51 // pred_fallthru
        _
    $region52: #{bneck_forward.1} parent=5 // pred_fallthru
      _
    %p311 = scmp.le.s32.totalorder 1, %s16
    %p312 = scmp.lt.s32.totalorder %s16, 3
    %p313 = pnand %p311, %p312
    %p314 = pneg %p313
    // Predicated region
    $region57: #{bneck_forward.1} parent=5 // pred_check
      _
    $region58: #{bneck_forward.1} parent=5 // pred_check_branch
      %316 = sbr.rel (%p313) target = $region60
    $region59: #{bneck_forward.1} parent=5 // pred_region
      %s317 = ssub.s32 %s16, 1
      %p318 = scmp.lt.s32.totalorder %s21, 1
      %s319 = scalar_select %p318, %s21, 1
      %s320 = smul.addr %s319, 2
      %s321 = smul.addr %s320, 8
      %s322 = scalar_lea.vmem %s0, %s321
      %p323 = pneg %p42
      %p324 = pneg %p39
      %p325 = pneg %p63
      %p326 = pneg %p60
      %p327 = pneg %p84
      %p328 = pneg %p81
      %p329 = pneg %p105
      %p330 = pneg %p102
      %p331 = pneg %p126
      %p332 = pneg %p123
      %p333 = pneg %p147
      %p334 = pneg %p144
      %p335 = pneg %p168
      %p336 = pneg %p165
      %p337 = pneg %p189
      %p338 = pneg %p186
      %p339 = pneg %p210
      %p340 = pneg %p207
      %p341 = pneg %p231
      %p342 = pneg %p228
      %p343 = pneg %p257
      %p344 = pneg %p254
      %p345 = scmp.lt.s32.totalorder %s21, 1
      %s346 = scalar_select %p345, %s21, 1
      %s347 = smul.addr %s346, 2
      %s348 = smul.addr %s347, 8
      %s349 = scalar_lea.vmem %s10, %s348
      %p350 = scmp.lt.s32.totalorder %s21, 1
      %s351 = scalar_select %p350, %s21, 1
      %s352 = smul.addr %s351, 2
      %s353 = smul.addr %s352, 8
      %s354 = scalar_lea.vmem %s0, %s353
      %p355 = scmp.lt.s32.totalorder %s21, 1
      %s356 = scalar_select %p355, %s21, 1
      %s357 = smul.addr %s356, 2
      %s358 = smul.addr %s357, 8
      %s359 = scalar_lea.vmem %s10, %s358
      %v360 = vld [vmem:[%s1] sm:$0xff]
      %v361 = vld [vmem:[%s1 + $0x8] sm:$0xff]
      %v362 = vld [vmem:[%s354] sm:$0xff]
      %v363 = vld [vmem:[%s354 + $0x8] sm:$0xff]
      %v364 = vld [vmem:[%s2] sm:$0xff]
      %v365 = vld [vmem:[%s2 + $0x8] sm:$0xff]
      %367 = vset.pattern.permute.xlu0 0
      %368 = vperm.xlu0 %367, %v364
      %v369 = vpop.permute.xlu0 %368
      %372 = vset.pattern.permute.xlu0 0
      %373 = vperm.xlu0 %372, %v365
      %v374 = vpop.permute.xlu0 %373
      %vm376 = vcmask 64512
      %v378 = vsel %vm376, %v360, 0
      %v381 = vsel %vm376, %v361, 0
      %383 = vmatprep.subr.mxu0 %v363
      %384 = vmatpush1.msra.mxu0 %v362
      %385 = vmatprep.subr.mxu0 0.0
      %386 = vmatpush1.msra.mxu0 0.0
      %387 = vmatprep.subr.mxu0 0.0
      %388 = vmatpush1.msra.mxu0 0.0
      %389 = vmatprep.subr.mxu0 0.0
      %390 = vmatpush1.msra.mxu0 0.0
      %391 = vmatprep.subr.mxu0 0.0
      %392 = vmatpush1.msra.mxu0 0.0
      %393 = vmatprep.subr.mxu0 0.0
      %394 = vmatpush1.msra.mxu0 0.0
      %395 = vmatprep.subr.mxu0 0.0
      %396 = vmatpush1.msra.mxu0 0.0
      %397 = vmatprep.subr.mxu0 0.0
      %398 = vmatpush1.msra.mxu0 0.0
      %399 = vmatprep.subr.mxu0 0.0
      %400 = vmatpush1.msra.mxu0 0.0
      %401 = vmatprep.subr.mxu0 0.0
      %402 = vmatpush1.msra.mxu0 0.0
      %403 = vmatprep.subr.mxu0 0.0
      %404 = vmatpush1.msra.mxu0 0.0
      %405 = vmatprep.subr.mxu0 0.0
      %406 = vmatpush1.msra.mxu0 0.0
      %407 = vmatprep.subr.mxu0 0.0
      %408 = vmatpush1.msra.mxu0 0.0
      %409 = vmatprep.subr.mxu0 0.0
      %410 = vmatpush1.msra.mxu0 0.0
      %411 = vmatprep.subr.mxu0 0.0
      %412 = vmatpush1.msra.mxu0 0.0
      %413 = vmatprep.subr.mxu0 0.0
      %414 = vmatpush1.msra.mxu0 0.0
      %415 = vmatprep.subr.mxu0 0.0
      %416 = vmatpush1.msra.mxu0 0.0
      %417 = vmatprep.subr.mxu0 0.0
      %418 = vmatpush1.msra.mxu0 0.0
      %419 = vmatprep.subr.mxu0 0.0
      %420 = vmatpush1.msra.mxu0 0.0
      %421 = vmatprep.subr.mxu0 0.0
      %422 = vmatpush1.msra.mxu0 0.0
      %423 = vmatprep.subr.mxu0 0.0
      %424 = vmatpush1.msra.mxu0 0.0
      %425 = vmatprep.subr.mxu0 0.0
      %426 = vmatpush1.msra.mxu0 0.0
      %427 = vmatprep.subr.mxu0 0.0
      %428 = vmatpush1.msra.mxu0 0.0
      %429 = vmatprep.subr.mxu0 0.0
      %430 = vmatpush1.msra.mxu0 0.0
      %431 = vmatprep.subr.mxu0 0.0
      %432 = vmatpush1.msra.mxu0 0.0
      %433 = vmatprep.subr.mxu0 0.0
      %434 = vmatpush1.msra.mxu0 0.0
      %435 = vmatprep.subr.mxu0 0.0
      %436 = vmatpush1.msra.mxu0 0.0
      %437 = vmatprep.subr.mxu0 0.0
      %438 = vmatpush1.msra.mxu0 0.0
      %439 = vmatprep.subr.mxu0 0.0
      %440 = vmatpush1.msra.mxu0 0.0
      %441 = vmatprep.subr.mxu0 0.0
      %442 = vmatpush1.msra.mxu0 0.0
      %443 = vmatprep.subr.mxu0 0.0
      %444 = vmatpush1.msra.mxu0 0.0
      %445 = vmatprep.subr.mxu0 0.0
      %446 = vmatpush1.msra.mxu0 0.0
      %447 = vmatprep.mubr.f32.mxu0 0.0
      %448 = vmatmul.mubr.f32.gmra.mrb[0].mxu0 %v378
      %v449 = vpop.f32.mrb[0].mxu0
      %v450 = vadd.f32 %v369, %v449
      %v451 = vpop.f32.mrb[0].mxu0
      %v452 = vadd.f32 %v369, %v451
      %453 = vmatprep.mubr.f32.mxu0 0.0
      %454 = vmatmul.mubr.f32.gmra.mrb[0].mxu0 %v381
      %v455 = vpop.f32.mrb[0].mxu0
      %v456 = vadd.f32 %v374, %v455
      %v457 = vpop.f32.mrb[0].mxu0
      %v458 = vadd.f32 %v374, %v457
      %459 = vdwg.mxu0
      %v460 = vadd.f32 %v450, 3.0
      %v461 = vadd.f32 %v452, 3.0
      %v462 = vadd.f32 %v456, 3.0
      %v463 = vadd.f32 %v458, 3.0
      %v464 = vmax.f32 %v460, 0.0
      %v465 = vmax.f32 %v461, 0.0
      %v466 = vmax.f32 %v462, 0.0
      %v467 = vmax.f32 %v463, 0.0
      %v468 = vmin.f32 %v464, 6.0
      %v469 = vmin.f32 %v465, 6.0
      %v470 = vmin.f32 %v466, 6.0
      %v471 = vmin.f32 %v467, 6.0
      %v472 = vmul.f32 %v450, %v468
      %v473 = vmul.f32 %v452, %v469
      %v474 = vmul.f32 %v456, %v470
      %v475 = vmul.f32 %v458, %v471
      %v476 = vmul.f32 %v472, 0.16666667
      %v477 = vmul.f32 %v473, 0.16666667
      %v478 = vmul.f32 %v474, 0.16666667
      %v479 = vmul.f32 %v475, 0.16666667
      %v480 = vld [vmem:[%s3] sm:$0xff]
      %v481 = vld [vmem:[%s3 + $0x8] sm:$0xff]
      %482 = vrot.lane.b32.xlu0 %v476, 17
      %v483 = vpop.permute.xlu0 %482
      %484 = vrot.lane.b32.xlu0 %v478, 17
      %v485 = vpop.permute.xlu0 %484
      %486 = vrot.lane.b32.xlu0 %v477, 17
      %v487 = vpop.permute.xlu0 %486
      %488 = vrot.lane.b32.xlu0 %v479, 17
      %v489 = vpop.permute.xlu0 %488
      %v490 = vlaneseq
      %v491 = vand.u32 %v490, 127
      %vm492 = vcmp.lt.s32.totalorder %v491, 17
      %v493 = vsel %vm492, %v483, %v487
      %v494 = vsel %vm492, %v485, %v489
      %v495 = vsel %vm492, %v487, %v483
      %v496 = vsel %vm492, %v489, %v485
      %v497 = vld [vmem:[%s5] ss:$8 sm:$0x3]
      %v499 = vlaneseq
      %v500 = vshrl.u32 %v499, 7
      %v501 = vsub.s32 0, %v500
      %v502 = vrot.slane %v497, %v501
      %v503 = vlaneseq
      %v504 = vshrl.u32 %v503, 7
      %v505 = vsub.s32 1, %v504
      %v506 = vrot.slane %v497, %v505
      %v509 = vmul.f32 %v495, %v502
      %v510 = vmul.f32 %v493, %v506
      %v511 = vmul.f32 %v496, %v502
      %v512 = vmul.f32 %v494, %v506
      %514 = vset.pattern.permute.xlu0 0
      %515 = vperm.xlu0 %514, %v480
      %v516 = vpop.permute.xlu0 %515
      %519 = vset.pattern.permute.xlu0 0
      %520 = vperm.xlu0 %519, %v481
      %v521 = vpop.permute.xlu0 %520
      %v523 = vmul.f32 %v509, %v516
      %v524 = vmul.f32 %v510, %v516
      %v525 = vmul.f32 %v511, %v521
      %v526 = vmul.f32 %v512, %v521
      %v527 = vadd.f32 %v523, 0.0
      %v528 = vadd.f32 %v524, 0.0
      %v529 = vadd.f32 %v525, 0.0
      %v530 = vadd.f32 %v526, 0.0
      %531 = vrot.lane.b32.xlu0 %v476, 16
      %v532 = vpop.permute.xlu0 %531
      %533 = vrot.lane.b32.xlu0 %v478, 16
      %v534 = vpop.permute.xlu0 %533
      %535 = vrot.lane.b32.xlu0 %v477, 16
      %v536 = vpop.permute.xlu0 %535
      %537 = vrot.lane.b32.xlu0 %v479, 16
      %v538 = vpop.permute.xlu0 %537
      %vm539 = vcmp.lt.s32.totalorder %v491, 16
      %v540 = vsel %vm539, %v532, %v536
      %v541 = vsel %vm539, %v534, %v538
      %v542 = vsel %vm539, %v536, %v532
      %v543 = vsel %vm539, %v538, %v534
      %s544 = scalar_lea.vmem %s5, 1
      %v545 = vld [vmem:[%s544] ss:$8 sm:$0x3]
      %v547 = vlaneseq
      %v548 = vshrl.u32 %v547, 7
      %v549 = vsub.s32 0, %v548
      %v550 = vrot.slane %v545, %v549
      %v551 = vlaneseq
      %v552 = vshrl.u32 %v551, 7
      %v553 = vsub.s32 1, %v552
      %v554 = vrot.slane %v545, %v553
      %v557 = vmul.f32 %v542, %v550
      %v558 = vmul.f32 %v540, %v554
      %v559 = vmul.f32 %v543, %v550
      %v560 = vmul.f32 %v541, %v554
      %561 = vset.pattern.permute.xlu0 1
      %562 = vperm.xlu0 %561, %v480
      %v563 = vpop.permute.xlu0 %562
      %565 = vset.pattern.permute.xlu0 1
      %566 = vperm.xlu0 %565, %v481
      %v567 = vpop.permute.xlu0 %566
      %v569 = vmul.f32 %v557, %v563
      %v570 = vmul.f32 %v558, %v563
      %v571 = vmul.f32 %v559, %v567
      %v572 = vmul.f32 %v560, %v567
      %v573 = vadd.f32 %v527, %v569
      %v574 = vadd.f32 %v528, %v570
      %v575 = vadd.f32 %v529, %v571
      %v576 = vadd.f32 %v530, %v572
      %577 = vrot.lane.b32.xlu0 %v476, 15
      %v578 = vpop.permute.xlu0 %577
      %579 = vrot.lane.b32.xlu0 %v478, 15
      %v580 = vpop.permute.xlu0 %579
      %581 = vrot.lane.b32.xlu0 %v477, 15
      %v582 = vpop.permute.xlu0 %581
      %583 = vrot.lane.b32.xlu0 %v479, 15
      %v584 = vpop.permute.xlu0 %583
      %vm585 = vcmp.lt.s32.totalorder %v491, 15
      %v586 = vsel %vm585, %v578, %v582
      %v587 = vsel %vm585, %v580, %v584
      %v588 = vsel %vm585, %v582, %v578
      %v589 = vsel %vm585, %v584, %v580
      %s590 = scalar_lea.vmem %s5, 2
      %v591 = vld [vmem:[%s590] ss:$8 sm:$0x3]
      %v593 = vlaneseq
      %v594 = vshrl.u32 %v593, 7
      %v595 = vsub.s32 0, %v594
      %v596 = vrot.slane %v591, %v595
      %v597 = vlaneseq
      %v598 = vshrl.u32 %v597, 7
      %v599 = vsub.s32 1, %v598
      %v600 = vrot.slane %v591, %v599
      %v603 = vmul.f32 %v588, %v596
      %v604 = vmul.f32 %v586, %v600
      %v605 = vmul.f32 %v589, %v596
      %v606 = vmul.f32 %v587, %v600
      %607 = vset.pattern.permute.xlu0 2
      %608 = vperm.xlu0 %607, %v480
      %v609 = vpop.permute.xlu0 %608
      %611 = vset.pattern.permute.xlu0 2
      %612 = vperm.xlu0 %611, %v481
      %v613 = vpop.permute.xlu0 %612
      %v615 = vmul.f32 %v603, %v609
      %v616 = vmul.f32 %v604, %v609
      %v617 = vmul.f32 %v605, %v613
      %v618 = vmul.f32 %v606, %v613
      %v619 = vadd.f32 %v573, %v615
      %v620 = vadd.f32 %v574, %v616
      %v621 = vadd.f32 %v575, %v617
      %v622 = vadd.f32 %v576, %v618
      %623 = vrot.lane.b32.xlu0 %v476, 1
      %v624 = vpop.permute.xlu0 %623
      %625 = vrot.lane.b32.xlu0 %v478, 1
      %v626 = vpop.permute.xlu0 %625
      %627 = vrot.lane.b32.xlu0 %v477, 1
      %v628 = vpop.permute.xlu0 %627
      %629 = vrot.lane.b32.xlu0 %v479, 1
      %v630 = vpop.permute.xlu0 %629
      %vm631 = vcmp.lt.s32.totalorder %v491, 1
      %v632 = vsel %vm631, %v624, %v628
      %v633 = vsel %vm631, %v626, %v630
      %v634 = vsel %vm631, %v628, %v624
      %v635 = vsel %vm631, %v630, %v626
      %s636 = scalar_lea.vmem %s5, 3
      %v637 = vld [vmem:[%s636] ss:$8 sm:$0x3]
      %v639 = vlaneseq
      %v640 = vshrl.u32 %v639, 7
      %v641 = vsub.s32 0, %v640
      %v642 = vrot.slane %v637, %v641
      %v643 = vlaneseq
      %v644 = vshrl.u32 %v643, 7
      %v645 = vsub.s32 1, %v644
      %v646 = vrot.slane %v637, %v645
      %v649 = vmul.f32 %v634, %v642
      %v650 = vmul.f32 %v632, %v646
      %v651 = vmul.f32 %v635, %v642
      %v652 = vmul.f32 %v633, %v646
      %653 = vset.pattern.permute.xlu0 3
      %654 = vperm.xlu0 %653, %v480
      %v655 = vpop.permute.xlu0 %654
      %657 = vset.pattern.permute.xlu0 3
      %658 = vperm.xlu0 %657, %v481
      %v659 = vpop.permute.xlu0 %658
      %v661 = vmul.f32 %v649, %v655
      %v662 = vmul.f32 %v650, %v655
      %v663 = vmul.f32 %v651, %v659
      %v664 = vmul.f32 %v652, %v659
      %v665 = vadd.f32 %v619, %v661
      %v666 = vadd.f32 %v620, %v662
      %v667 = vadd.f32 %v621, %v663
      %v668 = vadd.f32 %v622, %v664
      %669 = vset.pattern.permute.xlu0 4
      %670 = vperm.xlu0 %669, %v480
      %v671 = vpop.permute.xlu0 %670
      %673 = vset.pattern.permute.xlu0 4
      %674 = vperm.xlu0 %673, %v481
      %v675 = vpop.permute.xlu0 %674
      %v677 = vmul.f32 %v476, %v671
      %v678 = vmul.f32 %v477, %v671
      %v679 = vmul.f32 %v478, %v675
      %v680 = vmul.f32 %v479, %v675
      %v681 = vadd.f32 %v665, %v677
      %v682 = vadd.f32 %v666, %v678
      %v683 = vadd.f32 %v667, %v679
      %v684 = vadd.f32 %v668, %v680
      %685 = vrot.lane.b32.xlu0 %v476, 127
      %v686 = vpop.permute.xlu0 %685
      %687 = vrot.lane.b32.xlu0 %v478, 127
      %v688 = vpop.permute.xlu0 %687
      %689 = vrot.lane.b32.xlu0 %v477, 127
      %v690 = vpop.permute.xlu0 %689
      %691 = vrot.lane.b32.xlu0 %v479, 127
      %v692 = vpop.permute.xlu0 %691
      %vm693 = vcmp.lt.s32.totalorder %v491, 127
      %v694 = vsel %vm693, %v686, %v690
      %v695 = vsel %vm693, %v688, %v692
      %v696 = vsel %vm693, %v690, %v686
      %v697 = vsel %vm693, %v692, %v688
      %s698 = scalar_lea.vmem %s5, 5
      %v699 = vld [vmem:[%s698] ss:$8 sm:$0x3]
      %v701 = vlaneseq
      %v702 = vshrl.u32 %v701, 7
      %v703 = vsub.s32 0, %v702
      %v704 = vrot.slane %v699, %v703
      %v705 = vlaneseq
      %v706 = vshrl.u32 %v705, 7
      %v707 = vsub.s32 1, %v706
      %v708 = vrot.slane %v699, %v707
      %v711 = vmul.f32 %v694, %v704
      %v712 = vmul.f32 %v696, %v708
      %v713 = vmul.f32 %v695, %v704
      %v714 = vmul.f32 %v697, %v708
      %715 = vset.pattern.permute.xlu0 5
      %716 = vperm.xlu0 %715, %v480
      %v717 = vpop.permute.xlu0 %716
      %719 = vset.pattern.permute.xlu0 5
      %720 = vperm.xlu0 %719, %v481
      %v721 = vpop.permute.xlu0 %720
      %v723 = vmul.f32 %v711, %v717
      %v724 = vmul.f32 %v712, %v717
      %v725 = vmul.f32 %v713, %v721
      %v726 = vmul.f32 %v714, %v721
      %v727 = vadd.f32 %v681, %v723
      %v728 = vadd.f32 %v682, %v724
      %v729 = vadd.f32 %v683, %v725
      %v730 = vadd.f32 %v684, %v726
      %731 = vrot.lane.b32.xlu0 %v476, 113
      %v732 = vpop.permute.xlu0 %731
      %733 = vrot.lane.b32.xlu0 %v478, 113
      %v734 = vpop.permute.xlu0 %733
      %735 = vrot.lane.b32.xlu0 %v477, 113
      %v736 = vpop.permute.xlu0 %735
      %737 = vrot.lane.b32.xlu0 %v479, 113
      %v738 = vpop.permute.xlu0 %737
      %vm739 = vcmp.lt.s32.totalorder %v491, 113
      %v740 = vsel %vm739, %v732, %v736
      %v741 = vsel %vm739, %v734, %v738
      %v742 = vsel %vm739, %v736, %v732
      %v743 = vsel %vm739, %v738, %v734
      %s744 = scalar_lea.vmem %s5, 6
      %v745 = vld [vmem:[%s744] ss:$8 sm:$0x3]
      %v747 = vlaneseq
      %v748 = vshrl.u32 %v747, 7
      %v749 = vsub.s32 0, %v748
      %v750 = vrot.slane %v745, %v749
      %v751 = vlaneseq
      %v752 = vshrl.u32 %v751, 7
      %v753 = vsub.s32 1, %v752
      %v754 = vrot.slane %v745, %v753
      %v757 = vmul.f32 %v740, %v750
      %v758 = vmul.f32 %v742, %v754
      %v759 = vmul.f32 %v741, %v750
      %v760 = vmul.f32 %v743, %v754
      %761 = vset.pattern.permute.xlu0 6
      %762 = vperm.xlu0 %761, %v480
      %v763 = vpop.permute.xlu0 %762
      %765 = vset.pattern.permute.xlu0 6
      %766 = vperm.xlu0 %765, %v481
      %v767 = vpop.permute.xlu0 %766
      %v769 = vmul.f32 %v757, %v763
      %v770 = vmul.f32 %v758, %v763
      %v771 = vmul.f32 %v759, %v767
      %v772 = vmul.f32 %v760, %v767
      %v773 = vadd.f32 %v727, %v769
      %v774 = vadd.f32 %v728, %v770
      %v775 = vadd.f32 %v729, %v771
      %v776 = vadd.f32 %v730, %v772
      %777 = vrot.lane.b32.xlu0 %v476, 112
      %v778 = vpop.permute.xlu0 %777
      %779 = vrot.lane.b32.xlu0 %v478, 112
      %v780 = vpop.permute.xlu0 %779
      %781 = vrot.lane.b32.xlu0 %v477, 112
      %v782 = vpop.permute.xlu0 %781
      %783 = vrot.lane.b32.xlu0 %v479, 112
      %v784 = vpop.permute.xlu0 %783
      %vm785 = vcmp.lt.s32.totalorder %v491, 112
      %v786 = vsel %vm785, %v778, %v782
      %v787 = vsel %vm785, %v780, %v784
      %v788 = vsel %vm785, %v782, %v778
      %v789 = vsel %vm785, %v784, %v780
      %s790 = scalar_lea.vmem %s5, 7
      %v791 = vld [vmem:[%s790] ss:$8 sm:$0x3]
      %v793 = vlaneseq
      %v794 = vshrl.u32 %v793, 7
      %v795 = vsub.s32 0, %v794
      %v796 = vrot.slane %v791, %v795
      %v797 = vlaneseq
      %v798 = vshrl.u32 %v797, 7
      %v799 = vsub.s32 1, %v798
      %v800 = vrot.slane %v791, %v799
      %v803 = vmul.f32 %v786, %v796
      %v804 = vmul.f32 %v788, %v800
      %v805 = vmul.f32 %v787, %v796
      %v806 = vmul.f32 %v789, %v800
      %807 = vset.pattern.permute.xlu0 7
      %808 = vperm.xlu0 %807, %v480
      %v809 = vpop.permute.xlu0 %808
      %811 = vset.pattern.permute.xlu0 7
      %812 = vperm.xlu0 %811, %v481
      %v813 = vpop.permute.xlu0 %812
      %v815 = vmul.f32 %v803, %v809
      %v816 = vmul.f32 %v804, %v809
      %v817 = vmul.f32 %v805, %v813
      %v818 = vmul.f32 %v806, %v813
      %v819 = vadd.f32 %v773, %v815
      %v820 = vadd.f32 %v774, %v816
      %v821 = vadd.f32 %v775, %v817
      %v822 = vadd.f32 %v776, %v818
      %823 = vrot.lane.b32.xlu0 %v476, 111
      %v824 = vpop.permute.xlu0 %823
      %825 = vrot.lane.b32.xlu0 %v478, 111
      %v826 = vpop.permute.xlu0 %825
      %827 = vrot.lane.b32.xlu0 %v477, 111
      %v828 = vpop.permute.xlu0 %827
      %829 = vrot.lane.b32.xlu0 %v479, 111
      %v830 = vpop.permute.xlu0 %829
      %vm831 = vcmp.lt.s32.totalorder %v491, 111
      %v832 = vsel %vm831, %v824, %v828
      %v833 = vsel %vm831, %v826, %v830
      %v834 = vsel %vm831, %v828, %v824
      %v835 = vsel %vm831, %v830, %v826
      %s836 = scalar_lea.vmem %s5, 16
      %v837 = vld [vmem:[%s836] ss:$8 sm:$0x3]
      %v839 = vlaneseq
      %v840 = vshrl.u32 %v839, 7
      %v841 = vsub.s32 0, %v840
      %v842 = vrot.slane %v837, %v841
      %v843 = vlaneseq
      %v844 = vshrl.u32 %v843, 7
      %v845 = vsub.s32 1, %v844
      %v846 = vrot.slane %v837, %v845
      %v849 = vmul.f32 %v832, %v842
      %v850 = vmul.f32 %v834, %v846
      %v851 = vmul.f32 %v833, %v842
      %v852 = vmul.f32 %v835, %v846
      %853 = vset.pattern.permute.xlu0 8
      %854 = vperm.xlu0 %853, %v480
      %v855 = vpop.permute.xlu0 %854
      %857 = vset.pattern.permute.xlu0 8
      %858 = vperm.xlu0 %857, %v481
      %v859 = vpop.permute.xlu0 %858
      %v861 = vmul.f32 %v849, %v855
      %v862 = vmul.f32 %v850, %v855
      %v863 = vmul.f32 %v851, %v859
      %v864 = vmul.f32 %v852, %v859
      %v865 = vadd.f32 %v819, %v861
      %v866 = vadd.f32 %v820, %v862
      %v867 = vadd.f32 %v821, %v863
      %v868 = vadd.f32 %v822, %v864
      %v869 = vld [vmem:[%s4] sm:$0xff]
      %v870 = vld [vmem:[%s4 + $0x8] sm:$0xff]
      %872 = vset.pattern.permute.xlu0 0
      %873 = vperm.xlu0 %872, %v869
      %v874 = vpop.permute.xlu0 %873
      %877 = vset.pattern.permute.xlu0 0
      %878 = vperm.xlu0 %877, %v870
      %v879 = vpop.permute.xlu0 %878
      %v881 = vadd.f32 %v865, %v874
      %v882 = vadd.f32 %v866, %v874
      %v883 = vadd.f32 %v867, %v879
      %v884 = vadd.f32 %v868, %v879
      %v885 = vadd.f32 %v881, 3.0
      %v886 = vadd.f32 %v882, 3.0
      %v887 = vadd.f32 %v883, 3.0
      %v888 = vadd.f32 %v884, 3.0
      %v889 = vmax.f32 %v885, 0.0
      %v890 = vmax.f32 %v886, 0.0
      %v891 = vmax.f32 %v887, 0.0
      %v892 = vmax.f32 %v888, 0.0
      %v893 = vmin.f32 %v889, 6.0
      %v894 = vmin.f32 %v890, 6.0
      %v895 = vmin.f32 %v891, 6.0
      %v896 = vmin.f32 %v892, 6.0
      %v897 = vmul.f32 %v881, %v893
      %v898 = vmul.f32 %v882, %v894
      %v899 = vmul.f32 %v883, %v895
      %v900 = vmul.f32 %v884, %v896
      %v901 = vmul.f32 %v897, 0.16666667
      %v902 = vmul.f32 %v898, 0.16666667
      %v903 = vmul.f32 %v899, 0.16666667
      %v904 = vmul.f32 %v900, 0.16666667
      %v905 = vadd.f32 %v901, %v902
      %906 = vadd.xlane.f32.xlu0 %v905
      %v907 = vpop.xlane.xlu0 %906
      %v908 = vadd.f32 %v903, %v904
      %909 = vadd.xlane.f32.xlu0 %v908
      %v910 = vpop.xlane.xlu0 %909
      %v911 = vmul.f32 %v907, 0.00390625
      %v912 = vmul.f32 %v910, 0.00390625
      %v913 = vld [vmem:[%s6] sm:$0xf]
      %vm914 = vcmask 130048
      %v916 = vsel %vm914, %v913, 0
      %918 = vmatprep.subr.mxu0 0.0
      %919 = vmatpush1.msra.mxu0 %v911
      %920 = vmatprep.subr.mxu0 0.0
      %921 = vmatpush1.msra.mxu0 %v912
      %922 = vmatprep.subr.mxu0 0.0
      %923 = vmatpush1.msra.mxu0 0.0
      %924 = vmatprep.subr.mxu0 0.0
      %925 = vmatpush1.msra.mxu0 0.0
      %926 = vmatprep.subr.mxu0 0.0
      %927 = vmatpush1.msra.mxu0 0.0
      %928 = vmatprep.subr.mxu0 0.0
      %929 = vmatpush1.msra.mxu0 0.0
      %930 = vmatprep.subr.mxu0 0.0
      %931 = vmatpush1.msra.mxu0 0.0
      %932 = vmatprep.subr.mxu0 0.0
      %933 = vmatpush1.msra.mxu0 0.0
      %934 = vmatprep.subr.mxu0 0.0
      %935 = vmatpush1.msra.mxu0 0.0
      %936 = vmatprep.subr.mxu0 0.0
      %937 = vmatpush1.msra.mxu0 0.0
      %938 = vmatprep.subr.mxu0 0.0
      %939 = vmatpush1.msra.mxu0 0.0
      %940 = vmatprep.subr.mxu0 0.0
      %941 = vmatpush1.msra.mxu0 0.0
      %942 = vmatprep.subr.mxu0 0.0
      %943 = vmatpush1.msra.mxu0 0.0
      %944 = vmatprep.subr.mxu0 0.0
      %945 = vmatpush1.msra.mxu0 0.0
      %946 = vmatprep.subr.mxu0 0.0
      %947 = vmatpush1.msra.mxu0 0.0
      %948 = vmatprep.subr.mxu0 0.0
      %949 = vmatpush1.msra.mxu0 0.0
      %950 = vmatprep.subr.mxu0 0.0
      %951 = vmatpush1.msra.mxu0 0.0
      %952 = vmatprep.subr.mxu0 0.0
      %953 = vmatpush1.msra.mxu0 0.0
      %954 = vmatprep.subr.mxu0 0.0
      %955 = vmatpush1.msra.mxu0 0.0
      %956 = vmatprep.subr.mxu0 0.0
      %957 = vmatpush1.msra.mxu0 0.0
      %958 = vmatprep.subr.mxu0 0.0
      %959 = vmatpush1.msra.mxu0 0.0
      %960 = vmatprep.subr.mxu0 0.0
      %961 = vmatpush1.msra.mxu0 0.0
      %962 = vmatprep.subr.mxu0 0.0
      %963 = vmatpush1.msra.mxu0 0.0
      %964 = vmatprep.subr.mxu0 0.0
      %965 = vmatpush1.msra.mxu0 0.0
      %966 = vmatprep.subr.mxu0 0.0
      %967 = vmatpush1.msra.mxu0 0.0
      %968 = vmatprep.subr.mxu0 0.0
      %969 = vmatpush1.msra.mxu0 0.0
      %970 = vmatprep.subr.mxu0 0.0
      %971 = vmatpush1.msra.mxu0 0.0
      %972 = vmatprep.subr.mxu0 0.0
      %973 = vmatpush1.msra.mxu0 0.0
      %974 = vmatprep.subr.mxu0 0.0
      %975 = vmatpush1.msra.mxu0 0.0
      %976 = vmatprep.subr.mxu0 0.0
      %977 = vmatpush1.msra.mxu0 0.0
      %978 = vmatprep.subr.mxu0 0.0
      %979 = vmatpush1.msra.mxu0 0.0
      %980 = vmatprep.subr.mxu0 0.0
      %981 = vmatpush1.msra.mxu0 0.0
      %982 = vmatprep.mubr.f32.mxu0 0.0
      %983 = vmatmul.mubr.f32.gmra.mrb[0].mxu0 %v916
      %v984 = vpop.f32.mrb[0].mxu0
      %v985 = vadd.f32 0.0, %v984
      %v986 = vpop.f32.mrb[0].mxu0
      %987 = vdwg.mxu0
      %v988 = vmax.f32 %v985, 0.0
      %v989 = vld [vmem:[%s7] sm:$0xff]
      %v990 = vld [vmem:[%s7 + $0x8] sm:$0xff]
      %vm991 = vcmask 31744
      %v993 = vsel %vm991, %v989, 0
      %v996 = vsel %vm991, %v990, 0
      %vm998 = vcmask 1043456
      %v1000 = vsel %vm998, %v988, 0
      %1002 = vmatprep.subr.mxu0 0.0
      %1003 = vmatpush1.msra.mxu0 %v1000
      %1004 = vmatprep.subr.mxu0 0.0
      %1005 = vmatpush1.msra.mxu0 0.0
      %1006 = vmatprep.subr.mxu0 0.0
      %1007 = vmatpush1.msra.mxu0 0.0
      %1008 = vmatprep.subr.mxu0 0.0
      %1009 = vmatpush1.msra.mxu0 0.0
      %1010 = vmatprep.subr.mxu0 0.0
      %1011 = vmatpush1.msra.mxu0 0.0
      %1012 = vmatprep.subr.mxu0 0.0
      %1013 = vmatpush1.msra.mxu0 0.0
      %1014 = vmatprep.subr.mxu0 0.0
      %1015 = vmatpush1.msra.mxu0 0.0
      %1016 = vmatprep.subr.mxu0 0.0
      %1017 = vmatpush1.msra.mxu0 0.0
      %1018 = vmatprep.subr.mxu0 0.0
      %1019 = vmatpush1.msra.mxu0 0.0
      %1020 = vmatprep.subr.mxu0 0.0
      %1021 = vmatpush1.msra.mxu0 0.0
      %1022 = vmatprep.subr.mxu0 0.0
      %1023 = vmatpush1.msra.mxu0 0.0
      %1024 = vmatprep.subr.mxu0 0.0
      %1025 = vmatpush1.msra.mxu0 0.0
      %1026 = vmatprep.subr.mxu0 0.0
      %1027 = vmatpush1.msra.mxu0 0.0
      %1028 = vmatprep.subr.mxu0 0.0
      %1029 = vmatpush1.msra.mxu0 0.0
      %1030 = vmatprep.subr.mxu0 0.0
      %1031 = vmatpush1.msra.mxu0 0.0
      %1032 = vmatprep.subr.mxu0 0.0
      %1033 = vmatpush1.msra.mxu0 0.0
      %1034 = vmatprep.subr.mxu0 0.0
      %1035 = vmatpush1.msra.mxu0 0.0
      %1036 = vmatprep.subr.mxu0 0.0
      %1037 = vmatpush1.msra.mxu0 0.0
      %1038 = vmatprep.subr.mxu0 0.0
      %1039 = vmatpush1.msra.mxu0 0.0
      %1040 = vmatprep.subr.mxu0 0.0
      %1041 = vmatpush1.msra.mxu0 0.0
      %1042 = vmatprep.subr.mxu0 0.0
      %1043 = vmatpush1.msra.mxu0 0.0
      %1044 = vmatprep.subr.mxu0 0.0
      %1045 = vmatpush1.msra.mxu0 0.0
      %1046 = vmatprep.subr.mxu0 0.0
      %1047 = vmatpush1.msra.mxu0 0.0
      %1048 = vmatprep.subr.mxu0 0.0
      %1049 = vmatpush1.msra.mxu0 0.0
      %1050 = vmatprep.subr.mxu0 0.0
      %1051 = vmatpush1.msra.mxu0 0.0
      %1052 = vmatprep.subr.mxu0 0.0
      %1053 = vmatpush1.msra.mxu0 0.0
      %1054 = vmatprep.subr.mxu0 0.0
      %1055 = vmatpush1.msra.mxu0 0.0
      %1056 = vmatprep.subr.mxu0 0.0
      %1057 = vmatpush1.msra.mxu0 0.0
      %1058 = vmatprep.subr.mxu0 0.0
      %1059 = vmatpush1.msra.mxu0 0.0
      %1060 = vmatprep.subr.mxu0 0.0
      %1061 = vmatpush1.msra.mxu0 0.0
      %1062 = vmatprep.subr.mxu0 0.0
      %1063 = vmatpush1.msra.mxu0 0.0
      %1064 = vmatprep.subr.mxu0 0.0
      %1065 = vmatpush1.msra.mxu0 0.0
      %1066 = vmatprep.mubr.f32.mxu0 0.0
      %1067 = vmatmul.mubr.f32.gmra.mrb[0].mxu0 %v993
      %v1068 = vpop.f32.mrb[0].mxu0
      %v1069 = vadd.f32 3.0, %v1068
      %v1070 = vpop.f32.mrb[0].mxu0
      %1071 = vmatprep.mubr.f32.mxu0 0.0
      %1072 = vmatmul.mubr.f32.gmra.mrb[0].mxu0 %v996
      %v1073 = vpop.f32.mrb[0].mxu0
      %v1074 = vadd.f32 3.0, %v1073
      %v1075 = vpop.f32.mrb[0].mxu0
      %1076 = vdwg.mxu0
      %v1077 = vmax.f32 %v1069, 0.0
      %v1078 = vmax.f32 %v1074, 0.0
      %v1079 = vmin.f32 %v1077, 6.0
      %v1080 = vmin.f32 %v1078, 6.0
      %v1081 = vmul.f32 %v1079, 0.16666667
      %v1082 = vmul.f32 %v1080, 0.16666667
      %1084 = vset.pattern.permute.xlu0 0
      %1085 = vperm.xlu0 %1084, %v1081
      %v1086 = vpop.permute.xlu0 %1085
      %1089 = vset.pattern.permute.xlu0 0
      %1090 = vperm.xlu0 %1089, %v1082
      %v1091 = vpop.permute.xlu0 %1090
      %v1093 = vmul.f32 %v901, %v1086
      %v1094 = vmul.f32 %v902, %v1086
      %v1095 = vmul.f32 %v903, %v1091
      %v1096 = vmul.f32 %v904, %v1091
      %v1097 = vld [vmem:[%s8] sm:$0xff]
      %v1098 = vld [vmem:[%s9] sm:$0xff]
      %1100 = vset.pattern.permute.xlu0 0
      %1101 = vperm.xlu0 %1100, %v1098
      %v1102 = vpop.permute.xlu0 %1101
      %v1105 = vsel %vm914, %v1097, 0
      %1107 = vmatprep.subr.mxu0 %v1094
      %1108 = vmatpush1.msra.mxu0 %v1093
      %1109 = vmatprep.subr.mxu0 %v1096
      %1110 = vmatpush1.msra.mxu0 %v1095
      %1111 = vmatprep.subr.mxu0 0.0
      %1112 = vmatpush1.msra.mxu0 0.0
      %1113 = vmatprep.subr.mxu0 0.0
      %1114 = vmatpush1.msra.mxu0 0.0
      %1115 = vmatprep.subr.mxu0 0.0
      %1116 = vmatpush1.msra.mxu0 0.0
      %1117 = vmatprep.subr.mxu0 0.0
      %1118 = vmatpush1.msra.mxu0 0.0
      %1119 = vmatprep.subr.mxu0 0.0
      %1120 = vmatpush1.msra.mxu0 0.0
      %1121 = vmatprep.subr.mxu0 0.0
      %1122 = vmatpush1.msra.mxu0 0.0
      %1123 = vmatprep.subr.mxu0 0.0
      %1124 = vmatpush1.msra.mxu0 0.0
      %1125 = vmatprep.subr.mxu0 0.0
      %1126 = vmatpush1.msra.mxu0 0.0
      %1127 = vmatprep.subr.mxu0 0.0
      %1128 = vmatpush1.msra.mxu0 0.0
      %1129 = vmatprep.subr.mxu0 0.0
      %1130 = vmatpush1.msra.mxu0 0.0
      %1131 = vmatprep.subr.mxu0 0.0
      %1132 = vmatpush1.msra.mxu0 0.0
      %1133 = vmatprep.subr.mxu0 0.0
      %1134 = vmatpush1.msra.mxu0 0.0
      %1135 = vmatprep.subr.mxu0 0.0
      %1136 = vmatpush1.msra.mxu0 0.0
      %1137 = vmatprep.subr.mxu0 0.0
      %1138 = vmatpush1.msra.mxu0 0.0
      %1139 = vmatprep.subr.mxu0 0.0
      %1140 = vmatpush1.msra.mxu0 0.0
      %1141 = vmatprep.subr.mxu0 0.0
      %1142 = vmatpush1.msra.mxu0 0.0
      %1143 = vmatprep.subr.mxu0 0.0
      %1144 = vmatpush1.msra.mxu0 0.0
      %1145 = vmatprep.subr.mxu0 0.0
      %1146 = vmatpush1.msra.mxu0 0.0
      %1147 = vmatprep.subr.mxu0 0.0
      %1148 = vmatpush1.msra.mxu0 0.0
      %1149 = vmatprep.subr.mxu0 0.0
      %1150 = vmatpush1.msra.mxu0 0.0
      %1151 = vmatprep.subr.mxu0 0.0
      %1152 = vmatpush1.msra.mxu0 0.0
      %1153 = vmatprep.subr.mxu0 0.0
      %1154 = vmatpush1.msra.mxu0 0.0
      %1155 = vmatprep.subr.mxu0 0.0
      %1156 = vmatpush1.msra.mxu0 0.0
      %1157 = vmatprep.subr.mxu0 0.0
      %1158 = vmatpush1.msra.mxu0 0.0
      %1159 = vmatprep.subr.mxu0 0.0
      %1160 = vmatpush1.msra.mxu0 0.0
      %1161 = vmatprep.subr.mxu0 0.0
      %1162 = vmatpush1.msra.mxu0 0.0
      %1163 = vmatprep.subr.mxu0 0.0
      %1164 = vmatpush1.msra.mxu0 0.0
      %1165 = vmatprep.subr.mxu0 0.0
      %1166 = vmatpush1.msra.mxu0 0.0
      %1167 = vmatprep.subr.mxu0 0.0
      %1168 = vmatpush1.msra.mxu0 0.0
      %1169 = vmatprep.subr.mxu0 0.0
      %1170 = vmatpush1.msra.mxu0 0.0
      %1171 = vmatprep.mubr.f32.mxu0 0.0
      %1172 = vmatmul.mubr.f32.gmra.mrb[0].mxu0 %v1105
      %v1173 = vpop.f32.mrb[0].mxu0
      %v1174 = vadd.f32 %v1102, %v1173
      %v1175 = vpop.f32.mrb[0].mxu0
      %v1176 = vadd.f32 %v1102, %v1175
      %1177 = vdwg.mxu0
      %v1178 = vadd.f32 %v1174, %v362
      %v1179 = vadd.f32 %v1176, %v363
      %1180 = vst [vmem:[%s359] sm:$0xff] %v1178
      %1181 = vst [vmem:[%s359 + $0x8] sm:$0xff] %v1179
      %p1182 = scmp.lt.s32.totalorder %s21, 1
      %s1183 = scalar_select %p1182, %s21, 1
      %s1184 = smul.addr %s1183, 2
      %s1185 = smul.addr %s1184, 8
      %s1186 = scalar_lea.vmem %s10, %s1185
      // Predicated region
      $region61: #{bneck_forward.1} parent=59 // pred_check
        %p1187 = pneg %p254
      $region62: #{bneck_forward.1} parent=59 // pred_check_branch
        %1189 = sbr.rel (%p1187) target = $region64
      $region63: #{bneck_forward.1} parent=59 // pred_region
        _
      $region64: #{bneck_forward.1} parent=59 // pred_fallthru
        _
    $region60: #{bneck_forward.1} parent=5 // pred_fallthru
      _
    %p1190 = scmp.le.s32.totalorder 2, %s16
    // Predicated region
    $region65: #{bneck_forward.1} parent=5 // pred_check
      %p1191 = pneg %p1190
    $region66: #{bneck_forward.1} parent=5 // pred_check_branch
      %1193 = sbr.rel (%p1191) target = $region68
    $region67: #{bneck_forward.1} parent=5 // pred_region
      %s1194 = ssub.s32 %s16, 2
      // Predicated region
      $region69: #{bneck_forward.1} parent=67 // pred_check
        %p1195 = pneg %p260
      $region70: #{bneck_forward.1} parent=67 // pred_check_branch
        %1197 = sbr.rel (%p1195) target = $region72
      $region71: #{bneck_forward.1} parent=67 // pred_region
        %p1198 = scmp.lt.s32.totalorder %s22, 1
        %s1199 = scalar_select %p1198, %s22, 1
        %s1200 = smul.addr %s1199, 2
        %s1201 = smul.addr %s1200, 8
        %s1202 = scalar_lea.vmem %s10, %s1201
      $region72: #{bneck_forward.1} parent=67 // pred_fallthru
        _
    $region68: #{bneck_forward.1} parent=5 // pred_fallthru
      _
  $region6: #{bneck_forward.1} parent=0 // loop_footer
    %s20 = sadd.s32 1, %s16
  $region7: #{bneck_forward.1} parent=0 // loop_footer_branch
    %15 = sbr.rel target = $region3
  $region8: #{bneck_forward.1} parent=0 // loop_exit
    _

</llo_original>
